<compile_context>
chip_gen: v7x
topology: tpu7x:2x2x1
jax: 0.10.0
libtpu: 0.0.40
codegen_flags: <defaults>
</compile_context>

<pallas_src>
import functools

import jax
import jax.numpy as jnp
import numpy as np
from jax.experimental import pallas as pl
from jax.experimental.pallas import tpu as pltpu

BN_EPS = 1e-5  # nn.BatchNorm2d default


# ------------------------------ small helpers --------------------------------
def _vmem_limit_bytes():
    """Half of this generation's physical VMEM, clamped; leaves headroom for double buffers."""
    try:
        cap = int(pltpu.get_tpu_info().vmem_capacity_bytes)
    except Exception:
        cap = 64 * 1024 * 1024  # conservative fallback (v7x per-TC size)
    return int(min(max(cap // 2, 16 * 1024 * 1024), 96 * 1024 * 1024))


def _parity_order(length, stride):
    """Index order [parity 0 ascending, parity 1 ascending, ...]."""
    return np.concatenate(
        [np.arange(p, length, stride) for p in range(stride)]).astype(np.int32)


def _parity_tap_offsets(length, stride):
    """After parity reordering, original index d sits at start(d % s) + d // s."""
    counts = [len(range(p, length, stride)) for p in range(stride)]
    starts = [int(sum(counts[:p])) for p in range(stride)]
    return tuple(starts[d % stride] + d // stride for d in range(3))


# ----------------------------- Pallas kernels ---------------------------------
def _conv3x3_kernel(x_ref, w_ref, b_ref, iscale_ref, ishift_ref,
                    y_ref, sum_ref, m2_ref,
                    *, ho, wo, row_off, col_off, fuse_input_act):
    """One image of a circular 3x3 conv (+ bias) with per-image BN partial statistics.

    x_ref      : (1, Hin, Win, Cin) bf16  halo'd (parity-reordered if strided) image
    w_ref      : (9*Cin, Cout)      bf16  tap-major conv weights
    b_ref      : (1, Cout)          f32   conv bias
    iscale_ref : (1, Cin)           f32   previous layer's BN scale (fused path)
    ishift_ref : (1, Cin)           f32   previous layer's BN shift (fused path)
    y_ref      : (1, Ho*Wo, Cout)   bf16  raw (pre-BN) conv output
    sum_ref    : (1, 1, Cout)       f32   per-image channel sum of the rounded output
    m2_ref     : (1, 1, Cout)       f32   per-image centered sum of squares
    """
    cin = x_ref.shape[-1]
    xb = x_ref[0]                                            # (Hin, Win, Cin) bf16
    if fuse_input_act:
        # Fused BN + ReLU of the previous layer's raw output (hoisted scale/shift -> one FMA).
        xb = jnp.maximum(xb.astype(jnp.float32) * iscale_ref[0] + ishift_ref[0],
                         0.0).astype(jnp.bfloat16)

    # In-VMEM im2col over the 9 taps -> a single matmul with K = 9*Cin.
    taps = []
    for t in range(9):
        dy, dx = divmod(t, 3)
        r0, c0 = row_off[dy], col_off[dx]
        taps.append(xb[r0:r0 + ho, c0:c0 + wo, :])
    lhs = jnp.concatenate(taps, axis=-1).reshape(ho * wo, 9 * cin)
    acc = jnp.dot(lhs, w_ref[...], preferred_element_type=jnp.float32) + b_ref[...]

    y16 = acc.astype(y_ref.dtype)
    y_ref[0] = y16

    # BN partial stats on the *rounded* values (exactly what the next stage normalizes).
    yr = y16.astype(jnp.float32)
    s = jnp.sum(yr, axis=0, keepdims=True)                   # (1, Cout)
    d = yr - s * (1.0 / (ho * wo))
    sum_ref[0] = s
    m2_ref[0] = jnp.sum(d * d, axis=0, keepdims=True)


def _bn_relu_kernel(y_ref, scale_ref, shift_ref, o_ref):
    """Phase-2 normalize for one image: out = relu(y * scale + shift)."""
    y = y_ref[0].astype(jnp.float32)                         # (M, C)
    o_ref[0] = jnp.maximum(y * scale_ref[...] + shift_ref[...], 0.0)


# --------------------------- wrappers around kernels ---------------------------
def conv3x3_circular(x_nhwc, w_oihw, bias, in_scale, in_shift, *, stride, fuse_input_act):
    """3x3 circular conv (+ bias), bf16 MXU inputs / f32 accumulation.

    Returns the raw (pre-BN) output (N, Ho*Wo, Cout) in bf16 plus per-image BN partials
    (channel sum and centered sum-of-squares) for training-mode BatchNorm.
    """
    n, h, w, cin = x_nhwc.shape
    cout, cin_w = w_oihw.shape[0], w_oihw.shape[1]
    assert cin_w == cin
    assert h % stride == 0 and w % stride == 0, "circular conv path assumes stride | H, W"
    ho, wo = h // stride, w // stride
    hin, win = h + 2, w + 2

    # Single circular (+1 halo) pad.  For strided convs, reorder rows/cols by parity so that
    # every 3x3 tap is a unit-stride slice inside the kernel.  No per-block stacking.
    xp = jnp.pad(x_nhwc, ((0, 0), (1, 1), (1, 1), (0, 0)), mode="wrap")
    if stride > 1:
        xp = jnp.take(xp, jnp.asarray(_parity_order(hin, stride)), axis=1)
        xp = jnp.take(xp, jnp.asarray(_parity_order(win, stride)), axis=2)
    xp = xp.astype(jnp.bfloat16)

    # (Cout, Cin, 3, 3) -> (3, 3, Cin, Cout) -> (9*Cin, Cout): row = (3*dy + dx)*Cin + c,
    # matching the kernel's tap-concat order.
    wt = jnp.transpose(w_oihw, (2, 3, 1, 0)).reshape(9 * cin, cout).astype(jnp.bfloat16)
    bp = bias.astype(jnp.float32).reshape(1, cout)

    kernel = functools.partial(
        _conv3x3_kernel, ho=ho, wo=wo,
        row_off=_parity_tap_offsets(hin, stride),
        col_off=_parity_tap_offsets(win, stride),
        fuse_input_act=fuse_input_act)

    # TODO(synk): very large images would need a row-tiled grid with manual halo DMA; one
    # padded image per grid step fits VMEM comfortably at ResNet-scale spatial sizes.
    y, bsum, bm2 = pl.pallas_call(
        kernel,
        out_shape=(
            jax.ShapeDtypeStruct((n, ho * wo, cout), jnp.bfloat16),
            jax.ShapeDtypeStruct((n, 1, cout), jnp.float32),
            jax.ShapeDtypeStruct((n, 1, cout), jnp.float32),
        ),
        grid=(n,),
        in_specs=[
            pl.BlockSpec((1, hin, win, cin), lambda i: (i, 0, 0, 0)),
            pl.BlockSpec((9 * cin, cout), lambda i: (0, 0)),
            pl.BlockSpec((1, cout), lambda i: (0, 0)),
            pl.BlockSpec((1, cin), lambda i: (0, 0)),
            pl.BlockSpec((1, cin), lambda i: (0, 0)),
        ],
        out_specs=[
            pl.BlockSpec((1, ho * wo, cout), lambda i: (i, 0, 0)),
            pl.BlockSpec((1, 1, cout), lambda i: (i, 0, 0)),
            pl.BlockSpec((1, 1, cout), lambda i: (i, 0, 0)),
        ],
        compiler_params=pltpu.CompilerParams(
            dimension_semantics=("parallel",),   # per-image independent -> megacore-shardable
            vmem_limit_bytes=_vmem_limit_bytes(),
        ),
    )(xp, wt, bp, in_scale, in_shift)
    return y, bsum, bm2


def bn_relu_apply(y, scale, shift):
    """Phase-2 BN + ReLU over (N, M, C), 'parallel' grid over images."""
    n, m, c = y.shape
    return pl.pallas_call(
        _bn_relu_kernel,
        out_shape=jax.ShapeDtypeStruct((n, m, c), jnp.float32),
        grid=(n,),
        in_specs=[
            pl.BlockSpec((1, m, c), lambda i: (i, 0, 0)),
            pl.BlockSpec((1, c), lambda i: (0, 0)),
            pl.BlockSpec((1, c), lambda i: (0, 0)),
        ],
        out_specs=pl.BlockSpec((1, m, c), lambda i: (i, 0, 0)),
        compiler_params=pltpu.CompilerParams(
            dimension_semantics=("parallel",),
            vmem_limit_bytes=_vmem_limit_bytes(),
        ),
    )(y, scale, shift)


def _combine_bn_stats(bsum, bm2, m_per_block):
    """Parallel-variance combine of per-image (sum, centered-SSQ) partials -> (mean, var)."""
    nblk = bsum.shape[0]
    count = float(nblk * m_per_block)
    means = bsum / float(m_per_block)                        # (nblk, 1, C)
    mean = jnp.sum(bsum, axis=0) / count                     # (1, C)
    m2 = jnp.sum(bm2, axis=0) + float(m_per_block) * jnp.sum((means - mean) ** 2, axis=0)
    var = m2 / count                                         # biased var (BN normalization)
    return mean, var


def _bn_scale_shift(mean, var, gamma, beta):
    scale = gamma.reshape(1, -1) * jax.lax.rsqrt(var + BN_EPS)
    shift = beta.reshape(1, -1) - mean * scale
    return scale, shift


# ------------------------------- full forward ----------------------------------
def resnet_block_forward(x_nchw, params, stride):
    n, cin, h, w = x_nchw.shape
    ho, wo = h // stride, w // stride
    cout1 = params["w1"].shape[0]
    cout2 = params["w2"].shape[0]

    # NCHW -> NHWC once (channels-minor is the matmul-friendly layout).
    x = jnp.transpose(x_nchw, (0, 2, 3, 1))

    # --- conv1 + per-image BN1 partial statistics ---------------------------------
    y1, s1, m21 = conv3x3_circular(
        x, params["w1"], params["b1"],
        jnp.ones((1, cin), jnp.float32), jnp.zeros((1, cin), jnp.float32),
        stride=stride, fuse_input_act=False)
    mean1, var1 = _combine_bn_stats(s1, m21, ho * wo)
    scale1, shift1 = _bn_scale_shift(mean1, var1, params["g1"], params["beta1"])

    # --- conv2 with BN1 + ReLU fused onto its input, + BN2 partial statistics -----
    y2, s2, m22 = conv3x3_circular(
        y1.reshape(n, ho, wo, cout1), params["w2"], params["b2"], scale1, shift1,
        stride=1, fuse_input_act=True)
    mean2, var2 = _combine_bn_stats(s2, m22, ho * wo)
    scale2, shift2 = _bn_scale_shift(mean2, var2, params["g2"], params["beta2"])

    # --- BN2 + ReLU ("parallel" normalize kernel), then back to NCHW --------------
    z = bn_relu_apply(y2, scale2, shift2).reshape(n, ho, wo, cout2)
    return jnp.transpose(z, (0, 3, 1, 2))


# ---------------------------- plain-JAX reference -------------------------------
def reference_forward(x_nchw, params, stride):
    def conv_circ(x, w, b, s):
        xp = jnp.pad(x, ((0, 0), (0, 0), (1, 1), (1, 1)), mode="wrap")
        y = jax.lax.conv_general_dilated(
            xp, w, window_strides=(s, s), padding="VALID",
            dimension_numbers=("NCHW", "OIHW", "NCHW"),
            precision=jax.lax.Precision.HIGHEST)
        return y + b[None, :, None, None]

    def bn(x, g, bt):
        mean = jnp.mean(x, axis=(0, 2, 3), keepdims=True)
        var = jnp.mean(jnp.square(x - mean), axis=(0, 2, 3), keepdims=True)
        return (x - mean) * jax.lax.rsqrt(var + BN_EPS) * g[None, :, None, None] \
            + bt[None, :, None, None]

    y = jax.nn.relu(bn(conv_circ(x_nchw, params["w1"], params["b1"], stride),
                       params["g1"], params["beta1"]))
    z = jax.nn.relu(bn(conv_circ(y, params["w2"], params["b2"], 1),
                       params["g2"], params["beta2"]))
    return z


# ------------------------------------ main ---------------------------------------
if __name__ == "__main__":
    in_channels, out_channels, stride = 4, 8, 2
    N, H, W = 2, 16, 16

    key = jax.random.PRNGKey(0)
    ks = jax.random.split(key, 10)
    params = {
        # conv1: (Cout, Cin, 3, 3), conv2: (Cout, Cout, 3, 3)
        "w1": 0.2 * jax.random.normal(ks[0], (out_channels, in_channels, 3, 3), jnp.float32),
        "b1": 0.1 * jax.random.normal(ks[1], (out_channels,), jnp.float32),
        "g1": 1.0 + 0.1 * jax.random.normal(ks[2], (out_channels,), jnp.float32),
        "beta1": 0.1 * jax.random.normal(ks[3], (out_channels,), jnp.float32),
        "w2": 0.2 * jax.random.normal(ks[4], (out_channels, out_channels, 3, 3), jnp.float32),
        "b2": 0.1 * jax.random.normal(ks[5], (out_channels,), jnp.float32),
        "g2": 1.0 + 0.1 * jax.random.normal(ks[6], (out_channels,), jnp.float32),
        "beta2": 0.1 * jax.random.normal(ks[7], (out_channels,), jnp.float32),
    }
    x = jax.random.normal(ks[8], (N, in_channels, H, W), jnp.float32)

    fwd = jax.jit(functools.partial(resnet_block_forward, stride=stride))
    out = jax.block_until_ready(fwd(x, params))

    ref = jax.block_until_ready(reference_forward(x, params, stride))
    assert out.shape == ref.shape == (N, out_channels, H // stride, W // stride), out.shape
    # Tolerance accounts for bf16 MXU inputs (f32 accumulation) on the Pallas path.
    np.testing.assert_allclose(np.asarray(out), np.asarray(ref), atol=4e-2, rtol=4e-2)

    print("KERNEL_OK")
</pallas_src>

<mosaic_0001>
module attributes {stable_mosaic.version = 11 : i64} {
  func.func @_conv3x3_kernel(%arg0: i32, %arg1: memref<1x18x18x4xbf16, #tpu.memory_space<vmem>>, %arg2: memref<36x8xbf16, #tpu.memory_space<vmem>>, %arg3: memref<1x8xf32, #tpu.memory_space<vmem>>, %arg4: memref<1x4xf32, #tpu.memory_space<vmem>>, %arg5: memref<1x4xf32, #tpu.memory_space<vmem>>, %arg6: memref<1x64x8xbf16, #tpu.memory_space<vmem>>, %arg7: memref<1x1x8xf32, #tpu.memory_space<vmem>>, %arg8: memref<1x1x8xf32, #tpu.memory_space<vmem>>) attributes {dimension_semantics = [#tpu.dimension_semantics<parallel>], iteration_bounds = array<i64: 2>, scalar_prefetch = 0 : i64, scratch_operands = 0 : i64, tpu.core_type = #tpu.core_type<tc>, window_params = [{transform_indices = @transform_0, window_bounds = array<i64: 1, 18, 18, 4>}, {pipeline_mode = #tpu.pipeline_mode<synchronous>, transform_indices = @transform_1, window_bounds = array<i64: 36, 8>}, {pipeline_mode = #tpu.pipeline_mode<synchronous>, transform_indices = @transform_2, window_bounds = array<i64: 1, 8>}, {pipeline_mode = #tpu.pipeline_mode<synchronous>, transform_indices = @transform_3, window_bounds = array<i64: 1, 4>}, {pipeline_mode = #tpu.pipeline_mode<synchronous>, transform_indices = @transform_4, window_bounds = array<i64: 1, 4>}, {transform_indices = @transform_5, window_bounds = array<i64: 1, 64, 8>}, {transform_indices = @transform_6, window_bounds = array<i64: 1, 1, 8>}, {transform_indices = @transform_7, window_bounds = array<i64: 1, 1, 8>}]} {
    %c0 = arith.constant 0 : index
    %c0_0 = arith.constant 0 : index
    %c0_1 = arith.constant 0 : index
    %c0_2 = arith.constant 0 : index
    %0 = vector.load %arg1[%c0, %c0_0, %c0_1, %c0_2] : memref<1x18x18x4xbf16, #tpu.memory_space<vmem>>, vector<1x18x18x4xbf16>
    %1 = vector.shape_cast %0 : vector<1x18x18x4xbf16> to vector<18x18x4xbf16>
    %2 = vector.extract_strided_slice %1 {offsets = [0, 0, 0], sizes = [8, 8, 4], strides = [1, 1, 1]} : vector<18x18x4xbf16> to vector<8x8x4xbf16>
    %3 = vector.extract_strided_slice %1 {offsets = [0, 9, 0], sizes = [8, 8, 4], strides = [1, 1, 1]} : vector<18x18x4xbf16> to vector<8x8x4xbf16>
    %4 = vector.extract_strided_slice %1 {offsets = [0, 1, 0], sizes = [8, 8, 4], strides = [1, 1, 1]} : vector<18x18x4xbf16> to vector<8x8x4xbf16>
    %5 = vector.extract_strided_slice %1 {offsets = [9, 0, 0], sizes = [8, 8, 4], strides = [1, 1, 1]} : vector<18x18x4xbf16> to vector<8x8x4xbf16>
    %6 = vector.extract_strided_slice %1 {offsets = [9, 9, 0], sizes = [8, 8, 4], strides = [1, 1, 1]} : vector<18x18x4xbf16> to vector<8x8x4xbf16>
    %7 = vector.extract_strided_slice %1 {offsets = [9, 1, 0], sizes = [8, 8, 4], strides = [1, 1, 1]} : vector<18x18x4xbf16> to vector<8x8x4xbf16>
    %8 = vector.extract_strided_slice %1 {offsets = [1, 0, 0], sizes = [8, 8, 4], strides = [1, 1, 1]} : vector<18x18x4xbf16> to vector<8x8x4xbf16>
    %9 = vector.extract_strided_slice %1 {offsets = [1, 9, 0], sizes = [8, 8, 4], strides = [1, 1, 1]} : vector<18x18x4xbf16> to vector<8x8x4xbf16>
    %10 = vector.extract_strided_slice %1 {offsets = [1, 1, 0], sizes = [8, 8, 4], strides = [1, 1, 1]} : vector<18x18x4xbf16> to vector<8x8x4xbf16>
    %11 = tpu.concatenate %2, %3, %4, %5, %6, %7, %8, %9, %10 in 2 : vector<8x8x4xbf16>, vector<8x8x4xbf16>, vector<8x8x4xbf16>, vector<8x8x4xbf16>, vector<8x8x4xbf16>, vector<8x8x4xbf16>, vector<8x8x4xbf16>, vector<8x8x4xbf16>, vector<8x8x4xbf16> -> vector<8x8x36xbf16>
    %12 = vector.shape_cast %11 : vector<8x8x36xbf16> to vector<64x36xbf16>
    %c0_3 = arith.constant 0 : index
    %c0_4 = arith.constant 0 : index
    %13 = vector.load %arg2[%c0_3, %c0_4] : memref<36x8xbf16, #tpu.memory_space<vmem>>, vector<36x8xbf16>
    %cst = arith.constant dense<0.000000e+00> : vector<64x8xf32>
    %14 = tpu.matmul %12, %13, %cst {dimension_numbers = #tpu.dot_dimension_numbers<[1], [0], [0], [1], [0, 0, 1, 1], [], []>} : vector<64x36xbf16>, vector<36x8xbf16>, vector<64x8xf32> -> vector<64x8xf32>
    %c0_5 = arith.constant 0 : index
    %c0_6 = arith.constant 0 : index
    %15 = vector.load %arg3[%c0_5, %c0_6] : memref<1x8xf32, #tpu.memory_space<vmem>>, vector<1x8xf32>
    %16 = vector.broadcast %15 : vector<1x8xf32> to vector<64x8xf32>
    %17 = arith.addf %14, %16 : vector<64x8xf32>
    %18 = arith.truncf %17 : vector<64x8xf32> to vector<64x8xbf16>
    %c0_7 = arith.constant 0 : index
    %c0_8 = arith.constant 0 : index
    %c0_9 = arith.constant 0 : index
    %19 = vector.load %arg6[%c0_7, %c0_8, %c0_9] : memref<1x64x8xbf16, #tpu.memory_space<vmem>>, vector<1x64x8xbf16>
    %20 = vector.shape_cast %19 : vector<1x64x8xbf16> to vector<64x8xbf16>
    %21 = vector.shape_cast %18 : vector<64x8xbf16> to vector<1x64x8xbf16>
    tpu.vector_store %arg6[%c0_7, %c0_8, %c0_9], %21 {strides = array<i32>} : memref<1x64x8xbf16, #tpu.memory_space<vmem>>, vector<1x64x8xbf16>,
    %22 = arith.extf %18 : vector<64x8xbf16> to vector<64x8xf32>
    %cst_10 = arith.constant dense<0.000000e+00> : vector<8xf32>
    %23 = vector.multi_reduction <add>, %22, %cst_10 [0] : vector<64x8xf32> to vector<8xf32>
    %24 = vector.shape_cast %23 : vector<8xf32> to vector<1x8xf32>
    %cst_11 = arith.constant 1.562500e-02 : f32
    %25 = vector.broadcast %cst_11 : f32 to vector<1x8xf32>
    %26 = arith.mulf %24, %25 : vector<1x8xf32>
    %27 = vector.broadcast %26 : vector<1x8xf32> to vector<64x8xf32>
    %28 = arith.subf %22, %27 : vector<64x8xf32>
    %c0_12 = arith.constant 0 : index
    %c0_13 = arith.constant 0 : index
    %c0_14 = arith.constant 0 : index
    %29 = vector.load %arg7[%c0_12, %c0_13, %c0_14] : memref<1x1x8xf32, #tpu.memory_space<vmem>>, vector<1x1x8xf32>
    %30 = vector.shape_cast %29 : vector<1x1x8xf32> to vector<1x8xf32>
    %31 = vector.shape_cast %24 : vector<1x8xf32> to vector<1x1x8xf32>
    tpu.vector_store %arg7[%c0_12, %c0_13, %c0_14], %31 {strides = array<i32>} : memref<1x1x8xf32, #tpu.memory_space<vmem>>, vector<1x1x8xf32>,
    %32 = arith.mulf %28, %28 : vector<64x8xf32>
    %cst_15 = arith.constant dense<0.000000e+00> : vector<8xf32>
    %33 = vector.multi_reduction <add>, %32, %cst_15 [0] : vector<64x8xf32> to vector<8xf32>
    %34 = vector.shape_cast %33 : vector<8xf32> to vector<1x8xf32>
    %c0_16 = arith.constant 0 : index
    %c0_17 = arith.constant 0 : index
    %c0_18 = arith.constant 0 : index
    %35 = vector.load %arg8[%c0_16, %c0_17, %c0_18] : memref<1x1x8xf32, #tpu.memory_space<vmem>>, vector<1x1x8xf32>
    %36 = vector.shape_cast %35 : vector<1x1x8xf32> to vector<1x8xf32>
    %37 = vector.shape_cast %34 : vector<1x8xf32> to vector<1x1x8xf32>
    tpu.vector_store %arg8[%c0_16, %c0_17, %c0_18], %37 {strides = array<i32>} : memref<1x1x8xf32, #tpu.memory_space<vmem>>, vector<1x1x8xf32>,
    return
  }
  func.func @transform_0(%arg0: i32) -> (i32, i32, i32, i32) {
    %c0_i32 = arith.constant 0 : i32
    %c0_i32_0 = arith.constant 0 : i32
    %c0_i32_1 = arith.constant 0 : i32
    %c0_i32_2 = arith.constant 0 : i32
    return %arg0, %c0_i32, %c0_i32_0, %c0_i32_1 : i32, i32, i32, i32
  }
  func.func @transform_1(%arg0: i32) -> (i32, i32) {
    %c0_i32 = arith.constant 0 : i32
    %c0_i32_0 = arith.constant 0 : i32
    %c0_i32_1 = arith.constant 0 : i32
    return %c0_i32, %c0_i32_0 : i32, i32
  }
  func.func @transform_2(%arg0: i32) -> (i32, i32) {
    %c0_i32 = arith.constant 0 : i32
    %c0_i32_0 = arith.constant 0 : i32
    %c0_i32_1 = arith.constant 0 : i32
    return %c0_i32, %c0_i32_0 : i32, i32
  }
  func.func @transform_3(%arg0: i32) -> (i32, i32) {
    %c0_i32 = arith.constant 0 : i32
    %c0_i32_0 = arith.constant 0 : i32
    %c0_i32_1 = arith.constant 0 : i32
    return %c0_i32, %c0_i32_0 : i32, i32
  }
  func.func @transform_4(%arg0: i32) -> (i32, i32) {
    %c0_i32 = arith.constant 0 : i32
    %c0_i32_0 = arith.constant 0 : i32
    %c0_i32_1 = arith.constant 0 : i32
    return %c0_i32, %c0_i32_0 : i32, i32
  }
  func.func @transform_5(%arg0: i32) -> (i32, i32, i32) {
    %c0_i32 = arith.constant 0 : i32
    %c0_i32_0 = arith.constant 0 : i32
    %c0_i32_1 = arith.constant 0 : i32
    return %arg0, %c0_i32, %c0_i32_0 : i32, i32, i32
  }
  func.func @transform_6(%arg0: i32) -> (i32, i32, i32) {
    %c0_i32 = arith.constant 0 : i32
    %c0_i32_0 = arith.constant 0 : i32
    %c0_i32_1 = arith.constant 0 : i32
    return %arg0, %c0_i32, %c0_i32_0 : i32, i32, i32
  }
  func.func @transform_7(%arg0: i32) -> (i32, i32, i32) {
    %c0_i32 = arith.constant 0 : i32
    %c0_i32_0 = arith.constant 0 : i32
    %c0_i32_1 = arith.constant 0 : i32
    return %arg0, %c0_i32, %c0_i32_0 : i32, i32, i32
  }
}

module attributes {stable_mosaic.version = 11 : i64} {
  func.func @_conv3x3_kernel(%arg0: i32, %arg1: memref<1x10x10x8xbf16, #tpu.memory_space<vmem>>, %arg2: memref<72x8xbf16, #tpu.memory_space<vmem>>, %arg3: memref<1x8xf32, #tpu.memory_space<vmem>>, %arg4: memref<1x8xf32, #tpu.memory_space<vmem>>, %arg5: memref<1x8xf32, #tpu.memory_space<vmem>>, %arg6: memref<1x64x8xbf16, #tpu.memory_space<vmem>>, %arg7: memref<1x1x8xf32, #tpu.memory_space<vmem>>, %arg8: memref<1x1x8xf32, #tpu.memory_space<vmem>>) attributes {dimension_semantics = [#tpu.dimension_semantics<parallel>], iteration_bounds = array<i64: 2>, scalar_prefetch = 0 : i64, scratch_operands = 0 : i64, tpu.core_type = #tpu.core_type<tc>, window_params = [{transform_indices = @transform_0, window_bounds = array<i64: 1, 10, 10, 8>}, {pipeline_mode = #tpu.pipeline_mode<synchronous>, transform_indices = @transform_1, window_bounds = array<i64: 72, 8>}, {pipeline_mode = #tpu.pipeline_mode<synchronous>, transform_indices = @transform_2, window_bounds = array<i64: 1, 8>}, {pipeline_mode = #tpu.pipeline_mode<synchronous>, transform_indices = @transform_3, window_bounds = array<i64: 1, 8>}, {pipeline_mode = #tpu.pipeline_mode<synchronous>, transform_indices = @transform_4, window_bounds = array<i64: 1, 8>}, {transform_indices = @transform_5, window_bounds = array<i64: 1, 64, 8>}, {transform_indices = @transform_6, window_bounds = array<i64: 1, 1, 8>}, {transform_indices = @transform_7, window_bounds = array<i64: 1, 1, 8>}]} {
    %c0 = arith.constant 0 : index
    %c0_0 = arith.constant 0 : index
    %c0_1 = arith.constant 0 : index
    %c0_2 = arith.constant 0 : index
    %0 = vector.load %arg1[%c0, %c0_0, %c0_1, %c0_2] : memref<1x10x10x8xbf16, #tpu.memory_space<vmem>>, vector<1x10x10x8xbf16>
    %1 = vector.shape_cast %0 : vector<1x10x10x8xbf16> to vector<10x10x8xbf16>
    %2 = arith.extf %1 : vector<10x10x8xbf16> to vector<10x10x8xf32>
    %c0_3 = arith.constant 0 : index
    %c0_4 = arith.constant 0 : index
    %3 = vector.load %arg4[%c0_3, %c0_4] : memref<1x8xf32, #tpu.memory_space<vmem>>, vector<1x8xf32>
    %4 = vector.shape_cast %3 : vector<1x8xf32> to vector<8xf32>
    %5 = vector.shape_cast %4 : vector<8xf32> to vector<1x1x8xf32>
    %6 = vector.broadcast %5 : vector<1x1x8xf32> to vector<10x10x8xf32>
    %7 = arith.mulf %2, %6 : vector<10x10x8xf32>
    %c0_5 = arith.constant 0 : index
    %c0_6 = arith.constant 0 : index
    %8 = vector.load %arg5[%c0_5, %c0_6] : memref<1x8xf32, #tpu.memory_space<vmem>>, vector<1x8xf32>
    %9 = vector.shape_cast %8 : vector<1x8xf32> to vector<8xf32>
    %10 = vector.shape_cast %9 : vector<8xf32> to vector<1x1x8xf32>
    %11 = vector.broadcast %10 : vector<1x1x8xf32> to vector<10x10x8xf32>
    %12 = arith.addf %7, %11 : vector<10x10x8xf32>
    %cst = arith.constant 0.000000e+00 : f32
    %13 = vector.broadcast %cst : f32 to vector<10x10x8xf32>
    %14 = arith.maximumf %12, %13 : vector<10x10x8xf32>
    %15 = arith.truncf %14 : vector<10x10x8xf32> to vector<10x10x8xbf16>
    %16 = vector.extract_strided_slice %15 {offsets = [0, 0, 0], sizes = [8, 8, 8], strides = [1, 1, 1]} : vector<10x10x8xbf16> to vector<8x8x8xbf16>
    %17 = vector.extract_strided_slice %15 {offsets = [0, 1, 0], sizes = [8, 8, 8], strides = [1, 1, 1]} : vector<10x10x8xbf16> to vector<8x8x8xbf16>
    %18 = vector.extract_strided_slice %15 {offsets = [0, 2, 0], sizes = [8, 8, 8], strides = [1, 1, 1]} : vector<10x10x8xbf16> to vector<8x8x8xbf16>
    %19 = vector.extract_strided_slice %15 {offsets = [1, 0, 0], sizes = [8, 8, 8], strides = [1, 1, 1]} : vector<10x10x8xbf16> to vector<8x8x8xbf16>
    %20 = vector.extract_strided_slice %15 {offsets = [1, 1, 0], sizes = [8, 8, 8], strides = [1, 1, 1]} : vector<10x10x8xbf16> to vector<8x8x8xbf16>
    %21 = vector.extract_strided_slice %15 {offsets = [1, 2, 0], sizes = [8, 8, 8], strides = [1, 1, 1]} : vector<10x10x8xbf16> to vector<8x8x8xbf16>
    %22 = vector.extract_strided_slice %15 {offsets = [2, 0, 0], sizes = [8, 8, 8], strides = [1, 1, 1]} : vector<10x10x8xbf16> to vector<8x8x8xbf16>
    %23 = vector.extract_strided_slice %15 {offsets = [2, 1, 0], sizes = [8, 8, 8], strides = [1, 1, 1]} : vector<10x10x8xbf16> to vector<8x8x8xbf16>
    %24 = vector.extract_strided_slice %15 {offsets = [2, 2, 0], sizes = [8, 8, 8], strides = [1, 1, 1]} : vector<10x10x8xbf16> to vector<8x8x8xbf16>
    %25 = tpu.concatenate %16, %17, %18, %19, %20, %21, %22, %23, %24 in 2 : vector<8x8x8xbf16>, vector<8x8x8xbf16>, vector<8x8x8xbf16>, vector<8x8x8xbf16>, vector<8x8x8xbf16>, vector<8x8x8xbf16>, vector<8x8x8xbf16>, vector<8x8x8xbf16>, vector<8x8x8xbf16> -> vector<8x8x72xbf16>
    %26 = vector.shape_cast %25 : vector<8x8x72xbf16> to vector<64x72xbf16>
    %c0_7 = arith.constant 0 : index
    %c0_8 = arith.constant 0 : index
    %27 = vector.load %arg2[%c0_7, %c0_8] : memref<72x8xbf16, #tpu.memory_space<vmem>>, vector<72x8xbf16>
    %cst_9 = arith.constant dense<0.000000e+00> : vector<64x8xf32>
    %28 = tpu.matmul %26, %27, %cst_9 {dimension_numbers = #tpu.dot_dimension_numbers<[1], [0], [0], [1], [0, 0, 1, 1], [], []>} : vector<64x72xbf16>, vector<72x8xbf16>, vector<64x8xf32> -> vector<64x8xf32>
    %c0_10 = arith.constant 0 : index
    %c0_11 = arith.constant 0 : index
    %29 = vector.load %arg3[%c0_10, %c0_11] : memref<1x8xf32, #tpu.memory_space<vmem>>, vector<1x8xf32>
    %30 = vector.broadcast %29 : vector<1x8xf32> to vector<64x8xf32>
    %31 = arith.addf %28, %30 : vector<64x8xf32>
    %32 = arith.truncf %31 : vector<64x8xf32> to vector<64x8xbf16>
    %c0_12 = arith.constant 0 : index
    %c0_13 = arith.constant 0 : index
    %c0_14 = arith.constant 0 : index
    %33 = vector.load %arg6[%c0_12, %c0_13, %c0_14] : memref<1x64x8xbf16, #tpu.memory_space<vmem>>, vector<1x64x8xbf16>
    %34 = vector.shape_cast %33 : vector<1x64x8xbf16> to vector<64x8xbf16>
    %35 = vector.shape_cast %32 : vector<64x8xbf16> to vector<1x64x8xbf16>
    tpu.vector_store %arg6[%c0_12, %c0_13, %c0_14], %35 {strides = array<i32>} : memref<1x64x8xbf16, #tpu.memory_space<vmem>>, vector<1x64x8xbf16>,
    %36 = arith.extf %32 : vector<64x8xbf16> to vector<64x8xf32>
    %cst_15 = arith.constant dense<0.000000e+00> : vector<8xf32>
    %37 = vector.multi_reduction <add>, %36, %cst_15 [0] : vector<64x8xf32> to vector<8xf32>
    %38 = vector.shape_cast %37 : vector<8xf32> to vector<1x8xf32>
    %cst_16 = arith.constant 1.562500e-02 : f32
    %39 = vector.broadcast %cst_16 : f32 to vector<1x8xf32>
    %40 = arith.mulf %38, %39 : vector<1x8xf32>
    %41 = vector.broadcast %40 : vector<1x8xf32> to vector<64x8xf32>
    %42 = arith.subf %36, %41 : vector<64x8xf32>
    %c0_17 = arith.constant 0 : index
    %c0_18 = arith.constant 0 : index
    %c0_19 = arith.constant 0 : index
    %43 = vector.load %arg7[%c0_17, %c0_18, %c0_19] : memref<1x1x8xf32, #tpu.memory_space<vmem>>, vector<1x1x8xf32>
    %44 = vector.shape_cast %43 : vector<1x1x8xf32> to vector<1x8xf32>
    %45 = vector.shape_cast %38 : vector<1x8xf32> to vector<1x1x8xf32>
    tpu.vector_store %arg7[%c0_17, %c0_18, %c0_19], %45 {strides = array<i32>} : memref<1x1x8xf32, #tpu.memory_space<vmem>>, vector<1x1x8xf32>,
    %46 = arith.mulf %42, %42 : vector<64x8xf32>
    %cst_20 = arith.constant dense<0.000000e+00> : vector<8xf32>
    %47 = vector.multi_reduction <add>, %46, %cst_20 [0] : vector<64x8xf32> to vector<8xf32>
    %48 = vector.shape_cast %47 : vector<8xf32> to vector<1x8xf32>
    %c0_21 = arith.constant 0 : index
    %c0_22 = arith.constant 0 : index
    %c0_23 = arith.constant 0 : index
    %49 = vector.load %arg8[%c0_21, %c0_22, %c0_23] : memref<1x1x8xf32, #tpu.memory_space<vmem>>, vector<1x1x8xf32>
    %50 = vector.shape_cast %49 : vector<1x1x8xf32> to vector<1x8xf32>
    %51 = vector.shape_cast %48 : vector<1x8xf32> to vector<1x1x8xf32>
    tpu.vector_store %arg8[%c0_21, %c0_22, %c0_23], %51 {strides = array<i32>} : memref<1x1x8xf32, #tpu.memory_space<vmem>>, vector<1x1x8xf32>,
    return
  }
  func.func @transform_0(%arg0: i32) -> (i32, i32, i32, i32) {
    %c0_i32 = arith.constant 0 : i32
    %c0_i32_0 = arith.constant 0 : i32
    %c0_i32_1 = arith.constant 0 : i32
    %c0_i32_2 = arith.constant 0 : i32
    return %arg0, %c0_i32, %c0_i32_0, %c0_i32_1 : i32, i32, i32, i32
  }
  func.func @transform_1(%arg0: i32) -> (i32, i32) {
    %c0_i32 = arith.constant 0 : i32
    %c0_i32_0 = arith.constant 0 : i32
    %c0_i32_1 = arith.constant 0 : i32
    return %c0_i32, %c0_i32_0 : i32, i32
  }
  func.func @transform_2(%arg0: i32) -> (i32, i32) {
    %c0_i32 = arith.constant 0 : i32
    %c0_i32_0 = arith.constant 0 : i32
    %c0_i32_1 = arith.constant 0 : i32
    return %c0_i32, %c0_i32_0 : i32, i32
  }
  func.func @transform_3(%arg0: i32) -> (i32, i32) {
    %c0_i32 = arith.constant 0 : i32
    %c0_i32_0 = arith.constant 0 : i32
    %c0_i32_1 = arith.constant 0 : i32
    return %c0_i32, %c0_i32_0 : i32, i32
  }
  func.func @transform_4(%arg0: i32) -> (i32, i32) {
    %c0_i32 = arith.constant 0 : i32
    %c0_i32_0 = arith.constant 0 : i32
    %c0_i32_1 = arith.constant 0 : i32
    return %c0_i32, %c0_i32_0 : i32, i32
  }
  func.func @transform_5(%arg0: i32) -> (i32, i32, i32) {
    %c0_i32 = arith.constant 0 : i32
    %c0_i32_0 = arith.constant 0 : i32
    %c0_i32_1 = arith.constant 0 : i32
    return %arg0, %c0_i32, %c0_i32_0 : i32, i32, i32
  }
  func.func @transform_6(%arg0: i32) -> (i32, i32, i32) {
    %c0_i32 = arith.constant 0 : i32
    %c0_i32_0 = arith.constant 0 : i32
    %c0_i32_1 = arith.constant 0 : i32
    return %arg0, %c0_i32, %c0_i32_0 : i32, i32, i32
  }
  func.func @transform_7(%arg0: i32) -> (i32, i32, i32) {
    %c0_i32 = arith.constant 0 : i32
    %c0_i32_0 = arith.constant 0 : i32
    %c0_i32_1 = arith.constant 0 : i32
    return %arg0, %c0_i32, %c0_i32_0 : i32, i32, i32
  }
}

module attributes {stable_mosaic.version = 11 : i64} {
  func.func @_bn_relu_kernel(%arg0: i32, %arg1: memref<1x64x8xbf16, #tpu.memory_space<vmem>>, %arg2: memref<1x8xf32, #tpu.memory_space<vmem>>, %arg3: memref<1x8xf32, #tpu.memory_space<vmem>>, %arg4: memref<1x64x8xf32, #tpu.memory_space<vmem>>) attributes {dimension_semantics = [#tpu.dimension_semantics<parallel>], iteration_bounds = array<i64: 2>, scalar_prefetch = 0 : i64, scratch_operands = 0 : i64, tpu.core_type = #tpu.core_type<tc>, window_params = [{transform_indices = @transform_0, window_bounds = array<i64: 1, 64, 8>}, {pipeline_mode = #tpu.pipeline_mode<synchronous>, transform_indices = @transform_1, window_bounds = array<i64: 1, 8>}, {pipeline_mode = #tpu.pipeline_mode<synchronous>, transform_indices = @transform_2, window_bounds = array<i64: 1, 8>}, {transform_indices = @transform_3, window_bounds = array<i64: 1, 64, 8>}]} {
    %c0 = arith.constant 0 : index
    %c0_0 = arith.constant 0 : index
    %c0_1 = arith.constant 0 : index
    %0 = vector.load %arg1[%c0, %c0_0, %c0_1] : memref<1x64x8xbf16, #tpu.memory_space<vmem>>, vector<1x64x8xbf16>
    %1 = vector.shape_cast %0 : vector<1x64x8xbf16> to vector<64x8xbf16>
    %2 = arith.extf %1 : vector<64x8xbf16> to vector<64x8xf32>
    %c0_2 = arith.constant 0 : index
    %c0_3 = arith.constant 0 : index
    %3 = vector.load %arg2[%c0_2, %c0_3] : memref<1x8xf32, #tpu.memory_space<vmem>>, vector<1x8xf32>
    %4 = vector.broadcast %3 : vector<1x8xf32> to vector<64x8xf32>
    %5 = arith.mulf %2, %4 : vector<64x8xf32>
    %c0_4 = arith.constant 0 : index
    %c0_5 = arith.constant 0 : index
    %6 = vector.load %arg3[%c0_4, %c0_5] : memref<1x8xf32, #tpu.memory_space<vmem>>, vector<1x8xf32>
    %7 = vector.broadcast %6 : vector<1x8xf32> to vector<64x8xf32>
    %8 = arith.addf %5, %7 : vector<64x8xf32>
    %cst = arith.constant 0.000000e+00 : f32
    %9 = vector.broadcast %cst : f32 to vector<64x8xf32>
    %10 = arith.maximumf %8, %9 : vector<64x8xf32>
    %c0_6 = arith.constant 0 : index
    %c0_7 = arith.constant 0 : index
    %c0_8 = arith.constant 0 : index
    %11 = vector.load %arg4[%c0_6, %c0_7, %c0_8] : memref<1x64x8xf32, #tpu.memory_space<vmem>>, vector<1x64x8xf32>
    %12 = vector.shape_cast %11 : vector<1x64x8xf32> to vector<64x8xf32>
    %13 = vector.shape_cast %10 : vector<64x8xf32> to vector<1x64x8xf32>
    tpu.vector_store %arg4[%c0_6, %c0_7, %c0_8], %13 {strides = array<i32>} : memref<1x64x8xf32, #tpu.memory_space<vmem>>, vector<1x64x8xf32>,
    return
  }
  func.func @transform_0(%arg0: i32) -> (i32, i32, i32) {
    %c0_i32 = arith.constant 0 : i32
    %c0_i32_0 = arith.constant 0 : i32
    %c0_i32_1 = arith.constant 0 : i32
    return %arg0, %c0_i32, %c0_i32_0 : i32, i32, i32
  }
  func.func @transform_1(%arg0: i32) -> (i32, i32) {
    %c0_i32 = arith.constant 0 : i32
    %c0_i32_0 = arith.constant 0 : i32
    %c0_i32_1 = arith.constant 0 : i32
    return %c0_i32, %c0_i32_0 : i32, i32
  }
  func.func @transform_2(%arg0: i32) -> (i32, i32) {
    %c0_i32 = arith.constant 0 : i32
    %c0_i32_0 = arith.constant 0 : i32
    %c0_i32_1 = arith.constant 0 : i32
    return %c0_i32, %c0_i32_0 : i32, i32
  }
  func.func @transform_3(%arg0: i32) -> (i32, i32, i32) {
    %c0_i32 = arith.constant 0 : i32
    %c0_i32_0 = arith.constant 0 : i32
    %c0_i32_1 = arith.constant 0 : i32
    return %arg0, %c0_i32, %c0_i32_0 : i32, i32, i32
  }
}

</mosaic_0001>

<llo_original>
// kernel: resnet_block_forward.5
$region0: #{resnet_block_forward.5}
  #allocation0 [shape = 'u32[]', space=smem, size = 0x4, offset = 0x4, fixed_abs, tag = 'smem constant byte address 0x4 - core index']
  #allocation1 [shape = 'u32[144,128]{1,0:T(1,128)}', space=vmem, size = 0x12000, scoped, tag = 'internal scratch']
  %s0 = inlined_call_operand.vmem [shape: bf16[2,64,8], index: 0, kind: input, shape index: {}]
  %s1 = inlined_call_operand.vmem [shape: f32[1,8], index: 1, kind: input, shape index: {}]
  %s2 = inlined_call_operand.vmem [shape: f32[1,8], index: 2, kind: input, shape index: {}]
  %s3 = inlined_call_operand.vmem [shape: f32[2,64,8], index: 3, kind: output, shape index: {}]
  %s4 = sld [smem:[#allocation0]]
  $region45: #{resnet_block_forward.5} parent=0
    _
  %s6 = ssub.s32 1, %s4
  %s7 = scalar_select 0, %s6, %s4
  loop: start=0, step=1, limit=4
  $region2: #{resnet_block_forward.5} parent=0 // loop_pre_header
    _
  $region3: #{resnet_block_forward.5} parent=0 // loop_header
    %s9 = sphi 0, %s13
    %p10 = scmp.ge.s32.totalorder %s9, 4
    %s19 = sphi 0, %s21
    %s22 = sphi 0, %s19
    %s23 = sphi 0, %s22
    %s39 = sphi 0, %s23
    %s43 = sphi 0, %s43
    %s45 = sphi 0, %s43
    %s46 = sphi 0, %s45
    %s60 = sphi 0, %s46
    %s64 = sphi 0, %s64
    %s66 = sphi 0, %s64
    %s67 = sphi 0, %s66
    %s81 = sphi 0, %s67
    %s87 = sphi 0, %s89
    %s90 = sphi 0, %s87
    %s91 = sphi 0, %s90
    %s107 = sphi 0, %s91
  $region4: #{resnet_block_forward.5} parent=0 // loop_header_branch
    %12 = sbr.rel (%p10) target = $region8
  $region5: #{resnet_block_forward.5} parent=0 // loop_body
    %s14 = ssub.s32 %s9, 1
    %s15 = ssub.s32 %s9, 2
    %s16 = sadd.s32 %s9, 1
    %s17 = ssub.s32 %s9, %s16
    %p18 = scmp.eq.s32.totalorder %s17, 0
    %s20 = sadd.s32 %s19, 1
    %s21 = scalar_select %p18, %s19, %s20
    %p24 = pneg %p18
    %p25 = scmp.eq.s32.totalorder %s9, 1
    %p26 = por %p24, %p25
    %p27 = scmp.ne.s32.totalorder %s19, %s22
    %p28 = scmp.eq.s32.totalorder %s9, 0
    %p29 = por %p27, %p28
    %p30 = scmp.ne.s32.totalorder %s19, %s22
    %p31 = scmp.eq.s32.totalorder %s14, 1
    %p32 = por %p30, %p31
    %p33 = scmp.ne.s32.totalorder %s22, %s23
    %p34 = scmp.eq.s32.totalorder %s14, 0
    %p35 = por %p33, %p34
    %p36 = scmp.ne.s32.totalorder %s22, %s23
    %p37 = scmp.eq.s32.totalorder %s15, 1
    %p38 = por %p36, %p37
    %p40 = scmp.ne.s32.totalorder %s23, %s39
    %p41 = scmp.eq.s32.totalorder %s15, 0
    %p42 = por %p40, %p41
    %s44 = sadd.s32 %s43, 1
    %p47 = scmp.eq.s32.totalorder %s9, 1
    %p48 = scmp.ne.s32.totalorder %s43, %s45
    %p49 = scmp.eq.s32.totalorder %s9, 0
    %p50 = por %p48, %p49
    %p51 = scmp.ne.s32.totalorder %s43, %s45
    %p52 = scmp.eq.s32.totalorder %s14, 1
    %p53 = por %p51, %p52
    %p54 = scmp.ne.s32.totalorder %s45, %s46
    %p55 = scmp.eq.s32.totalorder %s14, 0
    %p56 = por %p54, %p55
    %p57 = scmp.ne.s32.totalorder %s45, %s46
    %p58 = scmp.eq.s32.totalorder %s15, 1
    %p59 = por %p57, %p58
    %p61 = scmp.ne.s32.totalorder %s46, %s60
    %p62 = scmp.eq.s32.totalorder %s15, 0
    %p63 = por %p61, %p62
    %s65 = sadd.s32 %s64, 1
    %p68 = scmp.eq.s32.totalorder %s9, 1
    %p69 = scmp.ne.s32.totalorder %s64, %s66
    %p70 = scmp.eq.s32.totalorder %s9, 0
    %p71 = por %p69, %p70
    %p72 = scmp.ne.s32.totalorder %s64, %s66
    %p73 = scmp.eq.s32.totalorder %s14, 1
    %p74 = por %p72, %p73
    %p75 = scmp.ne.s32.totalorder %s66, %s67
    %p76 = scmp.eq.s32.totalorder %s14, 0
    %p77 = por %p75, %p76
    %p78 = scmp.ne.s32.totalorder %s66, %s67
    %p79 = scmp.eq.s32.totalorder %s15, 1
    %p80 = por %p78, %p79
    %p82 = scmp.ne.s32.totalorder %s67, %s81
    %p83 = scmp.eq.s32.totalorder %s15, 0
    %p84 = por %p82, %p83
    %s85 = ssub.s32 %s9, %s16
    %p86 = scmp.eq.s32.totalorder %s85, 0
    %s88 = sadd.s32 %s87, 1
    %s89 = scalar_select %p86, %s87, %s88
    %p92 = pneg %p86
    %p93 = scmp.eq.s32.totalorder %s9, 1
    %p94 = por %p92, %p93
    %p95 = scmp.ne.s32.totalorder %s87, %s90
    %p96 = scmp.eq.s32.totalorder %s9, 0
    %p97 = por %p95, %p96
    %p98 = scmp.ne.s32.totalorder %s87, %s90
    %p99 = scmp.eq.s32.totalorder %s14, 1
    %p100 = por %p98, %p99
    %p101 = scmp.ne.s32.totalorder %s90, %s91
    %p102 = scmp.eq.s32.totalorder %s14, 0
    %p103 = por %p101, %p102
    %p104 = scmp.ne.s32.totalorder %s90, %s91
    %p105 = scmp.eq.s32.totalorder %s15, 1
    %p106 = por %p104, %p105
    %p108 = scmp.ne.s32.totalorder %s91, %s107
    %p109 = scmp.eq.s32.totalorder %s15, 0
    %p110 = por %p108, %p109
    %p111 = scmp.le.s32.totalorder 1, %s9
    %p112 = scmp.lt.s32.totalorder %s9, 3
    %p113 = pnand %p111, %p112
    %p114 = pneg %p113
    // Predicated region
    $region9: #{resnet_block_forward.5} parent=5 // pred_check
      _
    $region10: #{resnet_block_forward.5} parent=5 // pred_check_branch
      %116 = sbr.rel (%p113) target = $region12
    $region11: #{resnet_block_forward.5} parent=5 // pred_region
      %s117 = ssub.s32 %s9, 1
      // Predicated region
      $region13: #{resnet_block_forward.5} parent=11 // pred_check
        %p118 = pneg %p56
      $region14: #{resnet_block_forward.5} parent=11 // pred_check_branch
        %120 = sbr.rel (%p118) target = $region16
      $region15: #{resnet_block_forward.5} parent=11 // pred_region
        _
      $region16: #{resnet_block_forward.5} parent=11 // pred_fallthru
        _
      // Predicated region
      $region17: #{resnet_block_forward.5} parent=11 // pred_check
        %p121 = pneg %p77
      $region18: #{resnet_block_forward.5} parent=11 // pred_check_branch
        %123 = sbr.rel (%p121) target = $region20
      $region19: #{resnet_block_forward.5} parent=11 // pred_region
        _
      $region20: #{resnet_block_forward.5} parent=11 // pred_fallthru
        _
    $region12: #{resnet_block_forward.5} parent=5 // pred_fallthru
      _
    %p124 = scmp.lt.s32.totalorder %s9, 2
    // Predicated region
    $region21: #{resnet_block_forward.5} parent=5 // pred_check
      %p125 = pneg %p124
    $region22: #{resnet_block_forward.5} parent=5 // pred_check_branch
      %127 = sbr.rel (%p125) target = $region24
    $region23: #{resnet_block_forward.5} parent=5 // pred_region
      // Predicated region
      $region25: #{resnet_block_forward.5} parent=23 // pred_check
        %p128 = pneg %p29
      $region26: #{resnet_block_forward.5} parent=23 // pred_check_branch
        %130 = sbr.rel (%p128) target = $region28
      $region27: #{resnet_block_forward.5} parent=23 // pred_region
        %p131 = scmp.lt.s32.totalorder %s9, 1
        %s132 = scalar_select %p131, %s9, 1
        %s133 = smul.addr %s132, 8
        %s134 = smul.addr %s133, 4
        %s135 = scalar_lea.vmem %s0, %s134
      $region28: #{resnet_block_forward.5} parent=23 // pred_fallthru
        _
    $region24: #{resnet_block_forward.5} parent=5 // pred_fallthru
      _
    %p136 = scmp.le.s32.totalorder 1, %s9
    %p137 = scmp.lt.s32.totalorder %s9, 3
    %p138 = pnand %p136, %p137
    %p139 = pneg %p138
    // Predicated region
    $region29: #{resnet_block_forward.5} parent=5 // pred_check
      _
    $region30: #{resnet_block_forward.5} parent=5 // pred_check_branch
      %141 = sbr.rel (%p138) target = $region32
    $region31: #{resnet_block_forward.5} parent=5 // pred_region
      %s142 = ssub.s32 %s9, 1
      %p143 = scmp.lt.s32.totalorder %s14, 1
      %s144 = scalar_select %p143, %s14, 1
      %s145 = smul.addr %s144, 8
      %s146 = smul.addr %s145, 4
      %s147 = scalar_lea.vmem %s0, %s146
      %p148 = pneg %p35
      %p149 = pneg %p32
      %p150 = pneg %p56
      %p151 = pneg %p53
      %p152 = pneg %p77
      %p153 = pneg %p74
      %p154 = pneg %p103
      %p155 = pneg %p100
      %p156 = scmp.lt.s32.totalorder %s14, 1
      %s157 = scalar_select %p156, %s14, 1
      %s158 = smul.addr %s157, 8
      %s159 = smul.addr %s158, 8
      %s160 = scalar_lea.vmem %s3, %s159
      %p161 = scmp.lt.s32.totalorder %s14, 1
      %s162 = scalar_select %p161, %s14, 1
      %s163 = smul.addr %s162, 8
      %s164 = smul.addr %s163, 4
      %s165 = scalar_lea.vmem %s0, %s164
      %p166 = scmp.lt.s32.totalorder %s14, 1
      %s167 = scalar_select %p166, %s14, 1
      %s168 = smul.addr %s167, 8
      %s169 = smul.addr %s168, 8
      %s170 = scalar_lea.vmem %s3, %s169
      %v171 = vld [vmem:[%s165] sm:$0xf]
      %v172 = vld [vmem:[%s165 + $0x4] sm:$0xf]
      %v173 = vld [vmem:[%s165 + $0x8] sm:$0xf]
      %v174 = vld [vmem:[%s165 + $0xc] sm:$0xf]
      %v175 = vld [vmem:[%s165 + $0x10] sm:$0xf]
      %v176 = vld [vmem:[%s165 + $0x14] sm:$0xf]
      %v177 = vld [vmem:[%s165 + $0x18] sm:$0xf]
      %v178 = vld [vmem:[%s165 + $0x1c] sm:$0xf]
      %v179 = vunpack.c.l.bf16 %v171
      %v180 = vunpack.c.l.bf16 %v172
      %v181 = vunpack.c.l.bf16 %v173
      %v182 = vunpack.c.l.bf16 %v174
      %v183 = vunpack.c.l.bf16 %v175
      %v184 = vunpack.c.l.bf16 %v176
      %v185 = vunpack.c.l.bf16 %v177
      %v186 = vunpack.c.l.bf16 %v178
      %v187 = vld [vmem:[%s1] sm:$0x1]
      %v189 = vlaneseq
      %v190 = vshrl.u32 %v189, 7
      %v191 = vsub.s32 0, %v190
      %v192 = vrot.slane %v187, %v191
      %v194 = vmul.f32 %v179, %v192
      %v195 = vmul.f32 %v180, %v192
      %v196 = vmul.f32 %v181, %v192
      %v197 = vmul.f32 %v182, %v192
      %v198 = vmul.f32 %v183, %v192
      %v199 = vmul.f32 %v184, %v192
      %v200 = vmul.f32 %v185, %v192
      %v201 = vmul.f32 %v186, %v192
      %v202 = vld [vmem:[%s2] sm:$0x1]
      %v204 = vlaneseq
      %v205 = vshrl.u32 %v204, 7
      %v206 = vsub.s32 0, %v205
      %v207 = vrot.slane %v202, %v206
      %v209 = vadd.f32 %v194, %v207
      %v210 = vadd.f32 %v195, %v207
      %v211 = vadd.f32 %v196, %v207
      %v212 = vadd.f32 %v197, %v207
      %v213 = vadd.f32 %v198, %v207
      %v214 = vadd.f32 %v199, %v207
      %v215 = vadd.f32 %v200, %v207
      %v216 = vadd.f32 %v201, %v207
      %v217 = vmax.f32 %v209, 0.0
      %v218 = vmax.f32 %v210, 0.0
      %v219 = vmax.f32 %v211, 0.0
      %v220 = vmax.f32 %v212, 0.0
      %v221 = vmax.f32 %v213, 0.0
      %v222 = vmax.f32 %v214, 0.0
      %v223 = vmax.f32 %v215, 0.0
      %v224 = vmax.f32 %v216, 0.0
      %vm225 = vcmask 64512
      %226 = vst.msk [vmem:[%s170] sm:$0xff] %vm225, %v217
      %227 = vst.msk [vmem:[%s170 + $0x8] sm:$0xff] %vm225, %v218
      %228 = vst.msk [vmem:[%s170 + $0x10] sm:$0xff] %vm225, %v219
      %229 = vst.msk [vmem:[%s170 + $0x18] sm:$0xff] %vm225, %v220
      %230 = vst.msk [vmem:[%s170 + $0x20] sm:$0xff] %vm225, %v221
      %231 = vst.msk [vmem:[%s170 + $0x28] sm:$0xff] %vm225, %v222
      %232 = vst.msk [vmem:[%s170 + $0x30] sm:$0xff] %vm225, %v223
      %233 = vst.msk [vmem:[%s170 + $0x38] sm:$0xff] %vm225, %v224
      %p234 = scmp.lt.s32.totalorder %s14, 1
      %s235 = scalar_select %p234, %s14, 1
      %s236 = smul.addr %s235, 8
      %s237 = smul.addr %s236, 8
      %s238 = scalar_lea.vmem %s3, %s237
      // Predicated region
      $region33: #{resnet_block_forward.5} parent=31 // pred_check
        %p239 = pneg %p100
      $region34: #{resnet_block_forward.5} parent=31 // pred_check_branch
        %241 = sbr.rel (%p239) target = $region36
      $region35: #{resnet_block_forward.5} parent=31 // pred_region
        _
      $region36: #{resnet_block_forward.5} parent=31 // pred_fallthru
        _
    $region32: #{resnet_block_forward.5} parent=5 // pred_fallthru
      _
    %p242 = scmp.le.s32.totalorder 2, %s9
    // Predicated region
    $region37: #{resnet_block_forward.5} parent=5 // pred_check
      %p243 = pneg %p242
    $region38: #{resnet_block_forward.5} parent=5 // pred_check_branch
      %245 = sbr.rel (%p243) target = $region40
    $region39: #{resnet_block_forward.5} parent=5 // pred_region
      %s246 = ssub.s32 %s9, 2
      // Predicated region
      $region41: #{resnet_block_forward.5} parent=39 // pred_check
        %p247 = pneg %p106
      $region42: #{resnet_block_forward.5} parent=39 // pred_check_branch
        %249 = sbr.rel (%p247) target = $region44
      $region43: #{resnet_block_forward.5} parent=39 // pred_region
        %p250 = scmp.lt.s32.totalorder %s15, 1
        %s251 = scalar_select %p250, %s15, 1
        %s252 = smul.addr %s251, 8
        %s253 = smul.addr %s252, 8
        %s254 = scalar_lea.vmem %s3, %s253
      $region44: #{resnet_block_forward.5} parent=39 // pred_fallthru
        _
    $region40: #{resnet_block_forward.5} parent=5 // pred_fallthru
      _
  $region6: #{resnet_block_forward.5} parent=0 // loop_footer
    %s13 = sadd.s32 1, %s9
  $region7: #{resnet_block_forward.5} parent=0 // loop_footer_branch
    %8 = sbr.rel target = $region3
  $region8: #{resnet_block_forward.5} parent=0 // loop_exit
    _

// kernel: resnet_block_forward.4
$region0: #{resnet_block_forward.4}
  #allocation0 [shape = 'u32[]', space=smem, size = 0x4, offset = 0x4, fixed_abs, tag = 'smem constant byte address 0x4 - core index']
  #allocation1 [shape = 'u32[144,128]{1,0:T(1,128)}', space=vmem, size = 0x12000, scoped, tag = 'internal scratch']
  %s0 = inlined_call_operand.vmem [shape: bf16[2,10,10,8], index: 0, kind: input, shape index: {}]
  %s1 = inlined_call_operand.vmem [shape: bf16[72,8], index: 1, kind: input, shape index: {}]
  %s2 = inlined_call_operand.vmem [shape: f32[1,8], index: 2, kind: input, shape index: {}]
  %s3 = inlined_call_operand.vmem [shape: f32[1,8], index: 3, kind: input, shape index: {}]
  %s4 = inlined_call_operand.vmem [shape: f32[1,8], index: 4, kind: input, shape index: {}]
  %s5 = inlined_call_operand.vmem [shape: bf16[2,64,8], index: 5, kind: output, shape index: {0}]
  %s6 = inlined_call_operand.vmem [shape: f32[2,1,8], index: 6, kind: output, shape index: {1}]
  %s7 = inlined_call_operand.vmem [shape: f32[2,1,8], index: 7, kind: output, shape index: {2}]
  %8 = xla_tuple %s5, %s6, %s7
  %s9 = sld [smem:[#allocation0]]
  $region69: #{resnet_block_forward.4} parent=0
    _
  %s11 = ssub.s32 1, %s9
  %s12 = scalar_select 0, %s11, %s9
  loop: start=0, step=1, limit=4
  $region2: #{resnet_block_forward.4} parent=0 // loop_pre_header
    _
  $region3: #{resnet_block_forward.4} parent=0 // loop_header
    %s14 = sphi 0, %s18
    %p15 = scmp.ge.s32.totalorder %s14, 4
    %s24 = sphi 0, %s26
    %s27 = sphi 0, %s24
    %s28 = sphi 0, %s27
    %s44 = sphi 0, %s28
    %s48 = sphi 0, %s48
    %s50 = sphi 0, %s48
    %s51 = sphi 0, %s50
    %s65 = sphi 0, %s51
    %s69 = sphi 0, %s69
    %s71 = sphi 0, %s69
    %s72 = sphi 0, %s71
    %s86 = sphi 0, %s72
    %s90 = sphi 0, %s90
    %s92 = sphi 0, %s90
    %s93 = sphi 0, %s92
    %s107 = sphi 0, %s93
    %s111 = sphi 0, %s111
    %s113 = sphi 0, %s111
    %s114 = sphi 0, %s113
    %s128 = sphi 0, %s114
    %s134 = sphi 0, %s136
    %s137 = sphi 0, %s134
    %s138 = sphi 0, %s137
    %s154 = sphi 0, %s138
    %s160 = sphi 0, %s162
    %s163 = sphi 0, %s160
    %s164 = sphi 0, %s163
    %s180 = sphi 0, %s164
    %s186 = sphi 0, %s188
    %s189 = sphi 0, %s186
    %s190 = sphi 0, %s189
    %s206 = sphi 0, %s190
  $region4: #{resnet_block_forward.4} parent=0 // loop_header_branch
    %17 = sbr.rel (%p15) target = $region8
  $region5: #{resnet_block_forward.4} parent=0 // loop_body
    %s19 = ssub.s32 %s14, 1
    %s20 = ssub.s32 %s14, 2
    %s21 = sadd.s32 %s14, 1
    %s22 = ssub.s32 %s14, %s21
    %p23 = scmp.eq.s32.totalorder %s22, 0
    %s25 = sadd.s32 %s24, 1
    %s26 = scalar_select %p23, %s24, %s25
    %p29 = pneg %p23
    %p30 = scmp.eq.s32.totalorder %s14, 1
    %p31 = por %p29, %p30
    %p32 = scmp.ne.s32.totalorder %s24, %s27
    %p33 = scmp.eq.s32.totalorder %s14, 0
    %p34 = por %p32, %p33
    %p35 = scmp.ne.s32.totalorder %s24, %s27
    %p36 = scmp.eq.s32.totalorder %s19, 1
    %p37 = por %p35, %p36
    %p38 = scmp.ne.s32.totalorder %s27, %s28
    %p39 = scmp.eq.s32.totalorder %s19, 0
    %p40 = por %p38, %p39
    %p41 = scmp.ne.s32.totalorder %s27, %s28
    %p42 = scmp.eq.s32.totalorder %s20, 1
    %p43 = por %p41, %p42
    %p45 = scmp.ne.s32.totalorder %s28, %s44
    %p46 = scmp.eq.s32.totalorder %s20, 0
    %p47 = por %p45, %p46
    %s49 = sadd.s32 %s48, 1
    %p52 = scmp.eq.s32.totalorder %s14, 1
    %p53 = scmp.ne.s32.totalorder %s48, %s50
    %p54 = scmp.eq.s32.totalorder %s14, 0
    %p55 = por %p53, %p54
    %p56 = scmp.ne.s32.totalorder %s48, %s50
    %p57 = scmp.eq.s32.totalorder %s19, 1
    %p58 = por %p56, %p57
    %p59 = scmp.ne.s32.totalorder %s50, %s51
    %p60 = scmp.eq.s32.totalorder %s19, 0
    %p61 = por %p59, %p60
    %p62 = scmp.ne.s32.totalorder %s50, %s51
    %p63 = scmp.eq.s32.totalorder %s20, 1
    %p64 = por %p62, %p63
    %p66 = scmp.ne.s32.totalorder %s51, %s65
    %p67 = scmp.eq.s32.totalorder %s20, 0
    %p68 = por %p66, %p67
    %s70 = sadd.s32 %s69, 1
    %p73 = scmp.eq.s32.totalorder %s14, 1
    %p74 = scmp.ne.s32.totalorder %s69, %s71
    %p75 = scmp.eq.s32.totalorder %s14, 0
    %p76 = por %p74, %p75
    %p77 = scmp.ne.s32.totalorder %s69, %s71
    %p78 = scmp.eq.s32.totalorder %s19, 1
    %p79 = por %p77, %p78
    %p80 = scmp.ne.s32.totalorder %s71, %s72
    %p81 = scmp.eq.s32.totalorder %s19, 0
    %p82 = por %p80, %p81
    %p83 = scmp.ne.s32.totalorder %s71, %s72
    %p84 = scmp.eq.s32.totalorder %s20, 1
    %p85 = por %p83, %p84
    %p87 = scmp.ne.s32.totalorder %s72, %s86
    %p88 = scmp.eq.s32.totalorder %s20, 0
    %p89 = por %p87, %p88
    %s91 = sadd.s32 %s90, 1
    %p94 = scmp.eq.s32.totalorder %s14, 1
    %p95 = scmp.ne.s32.totalorder %s90, %s92
    %p96 = scmp.eq.s32.totalorder %s14, 0
    %p97 = por %p95, %p96
    %p98 = scmp.ne.s32.totalorder %s90, %s92
    %p99 = scmp.eq.s32.totalorder %s19, 1
    %p100 = por %p98, %p99
    %p101 = scmp.ne.s32.totalorder %s92, %s93
    %p102 = scmp.eq.s32.totalorder %s19, 0
    %p103 = por %p101, %p102
    %p104 = scmp.ne.s32.totalorder %s92, %s93
    %p105 = scmp.eq.s32.totalorder %s20, 1
    %p106 = por %p104, %p105
    %p108 = scmp.ne.s32.totalorder %s93, %s107
    %p109 = scmp.eq.s32.totalorder %s20, 0
    %p110 = por %p108, %p109
    %s112 = sadd.s32 %s111, 1
    %p115 = scmp.eq.s32.totalorder %s14, 1
    %p116 = scmp.ne.s32.totalorder %s111, %s113
    %p117 = scmp.eq.s32.totalorder %s14, 0
    %p118 = por %p116, %p117
    %p119 = scmp.ne.s32.totalorder %s111, %s113
    %p120 = scmp.eq.s32.totalorder %s19, 1
    %p121 = por %p119, %p120
    %p122 = scmp.ne.s32.totalorder %s113, %s114
    %p123 = scmp.eq.s32.totalorder %s19, 0
    %p124 = por %p122, %p123
    %p125 = scmp.ne.s32.totalorder %s113, %s114
    %p126 = scmp.eq.s32.totalorder %s20, 1
    %p127 = por %p125, %p126
    %p129 = scmp.ne.s32.totalorder %s114, %s128
    %p130 = scmp.eq.s32.totalorder %s20, 0
    %p131 = por %p129, %p130
    %s132 = ssub.s32 %s14, %s21
    %p133 = scmp.eq.s32.totalorder %s132, 0
    %s135 = sadd.s32 %s134, 1
    %s136 = scalar_select %p133, %s134, %s135
    %p139 = pneg %p133
    %p140 = scmp.eq.s32.totalorder %s14, 1
    %p141 = por %p139, %p140
    %p142 = scmp.ne.s32.totalorder %s134, %s137
    %p143 = scmp.eq.s32.totalorder %s14, 0
    %p144 = por %p142, %p143
    %p145 = scmp.ne.s32.totalorder %s134, %s137
    %p146 = scmp.eq.s32.totalorder %s19, 1
    %p147 = por %p145, %p146
    %p148 = scmp.ne.s32.totalorder %s137, %s138
    %p149 = scmp.eq.s32.totalorder %s19, 0
    %p150 = por %p148, %p149
    %p151 = scmp.ne.s32.totalorder %s137, %s138
    %p152 = scmp.eq.s32.totalorder %s20, 1
    %p153 = por %p151, %p152
    %p155 = scmp.ne.s32.totalorder %s138, %s154
    %p156 = scmp.eq.s32.totalorder %s20, 0
    %p157 = por %p155, %p156
    %s158 = ssub.s32 %s14, %s21
    %p159 = scmp.eq.s32.totalorder %s158, 0
    %s161 = sadd.s32 %s160, 1
    %s162 = scalar_select %p159, %s160, %s161
    %p165 = pneg %p159
    %p166 = scmp.eq.s32.totalorder %s14, 1
    %p167 = por %p165, %p166
    %p168 = scmp.ne.s32.totalorder %s160, %s163
    %p169 = scmp.eq.s32.totalorder %s14, 0
    %p170 = por %p168, %p169
    %p171 = scmp.ne.s32.totalorder %s160, %s163
    %p172 = scmp.eq.s32.totalorder %s19, 1
    %p173 = por %p171, %p172
    %p174 = scmp.ne.s32.totalorder %s163, %s164
    %p175 = scmp.eq.s32.totalorder %s19, 0
    %p176 = por %p174, %p175
    %p177 = scmp.ne.s32.totalorder %s163, %s164
    %p178 = scmp.eq.s32.totalorder %s20, 1
    %p179 = por %p177, %p178
    %p181 = scmp.ne.s32.totalorder %s164, %s180
    %p182 = scmp.eq.s32.totalorder %s20, 0
    %p183 = por %p181, %p182
    %s184 = ssub.s32 %s14, %s21
    %p185 = scmp.eq.s32.totalorder %s184, 0
    %s187 = sadd.s32 %s186, 1
    %s188 = scalar_select %p185, %s186, %s187
    %p191 = pneg %p185
    %p192 = scmp.eq.s32.totalorder %s14, 1
    %p193 = por %p191, %p192
    %p194 = scmp.ne.s32.totalorder %s186, %s189
    %p195 = scmp.eq.s32.totalorder %s14, 0
    %p196 = por %p194, %p195
    %p197 = scmp.ne.s32.totalorder %s186, %s189
    %p198 = scmp.eq.s32.totalorder %s19, 1
    %p199 = por %p197, %p198
    %p200 = scmp.ne.s32.totalorder %s189, %s190
    %p201 = scmp.eq.s32.totalorder %s19, 0
    %p202 = por %p200, %p201
    %p203 = scmp.ne.s32.totalorder %s189, %s190
    %p204 = scmp.eq.s32.totalorder %s20, 1
    %p205 = por %p203, %p204
    %p207 = scmp.ne.s32.totalorder %s190, %s206
    %p208 = scmp.eq.s32.totalorder %s20, 0
    %p209 = por %p207, %p208
    %p210 = scmp.le.s32.totalorder 1, %s14
    %p211 = scmp.lt.s32.totalorder %s14, 3
    %p212 = pnand %p210, %p211
    %p213 = pneg %p212
    // Predicated region
    $region9: #{resnet_block_forward.4} parent=5 // pred_check
      _
    $region10: #{resnet_block_forward.4} parent=5 // pred_check_branch
      %215 = sbr.rel (%p212) target = $region12
    $region11: #{resnet_block_forward.4} parent=5 // pred_region
      %s216 = ssub.s32 %s14, 1
      // Predicated region
      $region13: #{resnet_block_forward.4} parent=11 // pred_check
        %p217 = pneg %p61
      $region14: #{resnet_block_forward.4} parent=11 // pred_check_branch
        %219 = sbr.rel (%p217) target = $region16
      $region15: #{resnet_block_forward.4} parent=11 // pred_region
        _
      $region16: #{resnet_block_forward.4} parent=11 // pred_fallthru
        _
      // Predicated region
      $region17: #{resnet_block_forward.4} parent=11 // pred_check
        %p220 = pneg %p82
      $region18: #{resnet_block_forward.4} parent=11 // pred_check_branch
        %222 = sbr.rel (%p220) target = $region20
      $region19: #{resnet_block_forward.4} parent=11 // pred_region
        _
      $region20: #{resnet_block_forward.4} parent=11 // pred_fallthru
        _
      // Predicated region
      $region21: #{resnet_block_forward.4} parent=11 // pred_check
        %p223 = pneg %p103
      $region22: #{resnet_block_forward.4} parent=11 // pred_check_branch
        %225 = sbr.rel (%p223) target = $region24
      $region23: #{resnet_block_forward.4} parent=11 // pred_region
        _
      $region24: #{resnet_block_forward.4} parent=11 // pred_fallthru
        _
      // Predicated region
      $region25: #{resnet_block_forward.4} parent=11 // pred_check
        %p226 = pneg %p124
      $region26: #{resnet_block_forward.4} parent=11 // pred_check_branch
        %228 = sbr.rel (%p226) target = $region28
      $region27: #{resnet_block_forward.4} parent=11 // pred_region
        _
      $region28: #{resnet_block_forward.4} parent=11 // pred_fallthru
        _
    $region12: #{resnet_block_forward.4} parent=5 // pred_fallthru
      _
    %p229 = scmp.lt.s32.totalorder %s14, 2
    // Predicated region
    $region29: #{resnet_block_forward.4} parent=5 // pred_check
      %p230 = pneg %p229
    $region30: #{resnet_block_forward.4} parent=5 // pred_check_branch
      %232 = sbr.rel (%p230) target = $region32
    $region31: #{resnet_block_forward.4} parent=5 // pred_region
      // Predicated region
      $region33: #{resnet_block_forward.4} parent=31 // pred_check
        %p233 = pneg %p34
      $region34: #{resnet_block_forward.4} parent=31 // pred_check_branch
        %235 = sbr.rel (%p233) target = $region36
      $region35: #{resnet_block_forward.4} parent=31 // pred_region
        %p236 = scmp.lt.s32.totalorder %s14, 1
        %s237 = scalar_select %p236, %s14, 1
        %s238 = smul.addr %s237, 20
        %s239 = smul.addr %s238, 4
        %s240 = scalar_lea.vmem %s0, %s239
      $region36: #{resnet_block_forward.4} parent=31 // pred_fallthru
        _
    $region32: #{resnet_block_forward.4} parent=5 // pred_fallthru
      _
    %p241 = scmp.le.s32.totalorder 1, %s14
    %p242 = scmp.lt.s32.totalorder %s14, 3
    %p243 = pnand %p241, %p242
    %p244 = pneg %p243
    // Predicated region
    $region37: #{resnet_block_forward.4} parent=5 // pred_check
      _
    $region38: #{resnet_block_forward.4} parent=5 // pred_check_branch
      %246 = sbr.rel (%p243) target = $region40
    $region39: #{resnet_block_forward.4} parent=5 // pred_region
      %s247 = ssub.s32 %s14, 1
      %p248 = scmp.lt.s32.totalorder %s19, 1
      %s249 = scalar_select %p248, %s19, 1
      %s250 = smul.addr %s249, 20
      %s251 = smul.addr %s250, 4
      %s252 = scalar_lea.vmem %s0, %s251
      %p253 = pneg %p40
      %p254 = pneg %p37
      %p255 = pneg %p61
      %p256 = pneg %p58
      %p257 = pneg %p82
      %p258 = pneg %p79
      %p259 = pneg %p103
      %p260 = pneg %p100
      %p261 = pneg %p124
      %p262 = pneg %p121
      %p263 = pneg %p150
      %p264 = pneg %p147
      %p265 = scmp.lt.s32.totalorder %s19, 1
      %s266 = scalar_select %p265, %s19, 1
      %s267 = smul.addr %s266, 8
      %s268 = smul.addr %s267, 4
      %s269 = scalar_lea.vmem %s5, %s268
      %p270 = pneg %p176
      %p271 = pneg %p173
      %p272 = scmp.lt.s32.totalorder %s19, 1
      %s273 = scalar_select %p272, %s19, 1
      %s274 = scalar_lea.vmem %s6, %s273
      %p275 = pneg %p202
      %p276 = pneg %p199
      %p277 = scmp.lt.s32.totalorder %s19, 1
      %s278 = scalar_select %p277, %s19, 1
      %s279 = scalar_lea.vmem %s7, %s278
      %p280 = scmp.lt.s32.totalorder %s19, 1
      %s281 = scalar_select %p280, %s19, 1
      %s282 = smul.addr %s281, 20
      %s283 = smul.addr %s282, 4
      %s284 = scalar_lea.vmem %s0, %s283
      %p285 = scmp.lt.s32.totalorder %s19, 1
      %s286 = scalar_select %p285, %s19, 1
      %s287 = smul.addr %s286, 8
      %s288 = smul.addr %s287, 4
      %s289 = scalar_lea.vmem %s5, %s288
      %p290 = scmp.lt.s32.totalorder %s19, 1
      %s291 = scalar_select %p290, %s19, 1
      %s292 = scalar_lea.vmem %s6, %s291
      %p293 = scmp.lt.s32.totalorder %s19, 1
      %s294 = scalar_select %p293, %s19, 1
      %s295 = scalar_lea.vmem %s7, %s294
      %v297 = vld [vmem:[%s284] sm:$0xf]
      %v298 = vld [vmem:[%s284 + $0x4] sm:$0x1]
      %v299 = vld [vmem:[%s284 + $0x8] sm:$0xf]
      %v300 = vld [vmem:[%s284 + $0xc] sm:$0x1]
      %v301 = vld [vmem:[%s284 + $0x10] sm:$0xf]
      %v302 = vld [vmem:[%s284 + $0x14] sm:$0x1]
      %v303 = vld [vmem:[%s284 + $0x18] sm:$0xf]
      %v304 = vld [vmem:[%s284 + $0x1c] sm:$0x1]
      %v305 = vld [vmem:[%s284 + $0x20] sm:$0xf]
      %v306 = vld [vmem:[%s284 + $0x24] sm:$0x1]
      %v307 = vld [vmem:[%s284 + $0x28] sm:$0xf]
      %v308 = vld [vmem:[%s284 + $0x2c] sm:$0x1]
      %v309 = vld [vmem:[%s284 + $0x30] sm:$0xf]
      %v310 = vld [vmem:[%s284 + $0x34] sm:$0x1]
      %v311 = vld [vmem:[%s284 + $0x38] sm:$0xf]
      %v312 = vld [vmem:[%s284 + $0x3c] sm:$0x1]
      %v313 = vld [vmem:[%s284 + $0x40] sm:$0xf]
      %v314 = vld [vmem:[%s284 + $0x44] sm:$0x1]
      %v315 = vld [vmem:[%s284 + $0x48] sm:$0xf]
      %v316 = vld [vmem:[%s284 + $0x4c] sm:$0x1]
      %v317 = vunpack.c.l.bf16 %v297
      %v318 = vunpack.c.l.bf16 %v298
      %v319 = vunpack.c.l.bf16 %v299
      %v320 = vunpack.c.l.bf16 %v300
      %v321 = vunpack.c.l.bf16 %v301
      %v322 = vunpack.c.l.bf16 %v302
      %v323 = vunpack.c.l.bf16 %v303
      %v324 = vunpack.c.l.bf16 %v304
      %v325 = vunpack.c.l.bf16 %v305
      %v326 = vunpack.c.l.bf16 %v306
      %v327 = vunpack.c.l.bf16 %v307
      %v328 = vunpack.c.l.bf16 %v308
      %v329 = vunpack.c.l.bf16 %v309
      %v330 = vunpack.c.l.bf16 %v310
      %v331 = vunpack.c.l.bf16 %v311
      %v332 = vunpack.c.l.bf16 %v312
      %v333 = vunpack.c.l.bf16 %v313
      %v334 = vunpack.c.l.bf16 %v314
      %v335 = vunpack.c.l.bf16 %v315
      %v336 = vunpack.c.l.bf16 %v316
      %v337 = vld [vmem:[%s3] sm:$0x1]
      %v339 = vlaneseq
      %v340 = vshrl.u32 %v339, 7
      %v341 = vsub.s32 0, %v340
      %v342 = vrot.slane %v337, %v341
      %v344 = vmul.f32 %v317, %v342
      %v345 = vmul.f32 %v318, %v342
      %v346 = vmul.f32 %v319, %v342
      %v347 = vmul.f32 %v320, %v342
      %v348 = vmul.f32 %v321, %v342
      %v349 = vmul.f32 %v322, %v342
      %v350 = vmul.f32 %v323, %v342
      %v351 = vmul.f32 %v324, %v342
      %v352 = vmul.f32 %v325, %v342
      %v353 = vmul.f32 %v326, %v342
      %v354 = vmul.f32 %v327, %v342
      %v355 = vmul.f32 %v328, %v342
      %v356 = vmul.f32 %v329, %v342
      %v357 = vmul.f32 %v330, %v342
      %v358 = vmul.f32 %v331, %v342
      %v359 = vmul.f32 %v332, %v342
      %v360 = vmul.f32 %v333, %v342
      %v361 = vmul.f32 %v334, %v342
      %v362 = vmul.f32 %v335, %v342
      %v363 = vmul.f32 %v336, %v342
      %v364 = vld [vmem:[%s4] sm:$0x1]
      %v366 = vlaneseq
      %v367 = vshrl.u32 %v366, 7
      %v368 = vsub.s32 0, %v367
      %v369 = vrot.slane %v364, %v368
      %v371 = vadd.f32 %v344, %v369
      %v372 = vadd.f32 %v345, %v369
      %v373 = vadd.f32 %v346, %v369
      %v374 = vadd.f32 %v347, %v369
      %v375 = vadd.f32 %v348, %v369
      %v376 = vadd.f32 %v349, %v369
      %v377 = vadd.f32 %v350, %v369
      %v378 = vadd.f32 %v351, %v369
      %v379 = vadd.f32 %v352, %v369
      %v380 = vadd.f32 %v353, %v369
      %v381 = vadd.f32 %v354, %v369
      %v382 = vadd.f32 %v355, %v369
      %v383 = vadd.f32 %v356, %v369
      %v384 = vadd.f32 %v357, %v369
      %v385 = vadd.f32 %v358, %v369
      %v386 = vadd.f32 %v359, %v369
      %v387 = vadd.f32 %v360, %v369
      %v388 = vadd.f32 %v361, %v369
      %v389 = vadd.f32 %v362, %v369
      %v390 = vadd.f32 %v363, %v369
      %v391 = vmax.f32 %v371, 0.0
      %v392 = vmax.f32 %v372, 0.0
      %v393 = vmax.f32 %v373, 0.0
      %v394 = vmax.f32 %v374, 0.0
      %v395 = vmax.f32 %v375, 0.0
      %v396 = vmax.f32 %v376, 0.0
      %v397 = vmax.f32 %v377, 0.0
      %v398 = vmax.f32 %v378, 0.0
      %v399 = vmax.f32 %v379, 0.0
      %v400 = vmax.f32 %v380, 0.0
      %v401 = vmax.f32 %v381, 0.0
      %v402 = vmax.f32 %v382, 0.0
      %v403 = vmax.f32 %v383, 0.0
      %v404 = vmax.f32 %v384, 0.0
      %v405 = vmax.f32 %v385, 0.0
      %v406 = vmax.f32 %v386, 0.0
      %v407 = vmax.f32 %v387, 0.0
      %v408 = vmax.f32 %v388, 0.0
      %v409 = vmax.f32 %v389, 0.0
      %v410 = vmax.f32 %v390, 0.0
      %v411 = vpack.c.bf16 %v392, %v391
      %v412 = vpack.c.bf16 %v394, %v393
      %v413 = vpack.c.bf16 %v396, %v395
      %v414 = vpack.c.bf16 %v398, %v397
      %v415 = vpack.c.bf16 %v400, %v399
      %v416 = vpack.c.bf16 %v402, %v401
      %v417 = vpack.c.bf16 %v404, %v403
      %v418 = vpack.c.bf16 %v406, %v405
      %v419 = vpack.c.bf16 %v408, %v407
      %v420 = vpack.c.bf16 %v410, %v409
      %v422 = vshrl.u32 %v411, 16
      %v424 = vshll.u32 %v411, 16
      %v426 = vrot.slane %v424, 1
      %v427 = vor.u32 %v422, %v426
      %v429 = vshrl.u32 %v412, 16
      %v431 = vshll.u32 %v412, 16
      %v433 = vrot.slane %v431, 1
      %v434 = vor.u32 %v429, %v433
      %v436 = vshrl.u32 %v413, 16
      %v438 = vshll.u32 %v413, 16
      %v440 = vrot.slane %v438, 1
      %v441 = vor.u32 %v436, %v440
      %v443 = vshrl.u32 %v414, 16
      %v445 = vshll.u32 %v414, 16
      %v447 = vrot.slane %v445, 1
      %v448 = vor.u32 %v443, %v447
      %v450 = vshrl.u32 %v415, 16
      %v452 = vshll.u32 %v415, 16
      %v454 = vrot.slane %v452, 1
      %v455 = vor.u32 %v450, %v454
      %v457 = vshrl.u32 %v416, 16
      %v459 = vshll.u32 %v416, 16
      %v461 = vrot.slane %v459, 1
      %v462 = vor.u32 %v457, %v461
      %v464 = vshrl.u32 %v417, 16
      %v466 = vshll.u32 %v417, 16
      %v468 = vrot.slane %v466, 1
      %v469 = vor.u32 %v464, %v468
      %v471 = vshrl.u32 %v418, 16
      %v473 = vshll.u32 %v418, 16
      %v475 = vrot.slane %v473, 1
      %v476 = vor.u32 %v471, %v475
      %477 = vrot.lane.b32.xlu0 %v427, 8
      %v478 = vpop.permute.xlu0 %477
      %479 = vrot.lane.b32.xlu0 %v434, 8
      %v480 = vpop.permute.xlu0 %479
      %481 = vrot.lane.b32.xlu0 %v441, 8
      %v482 = vpop.permute.xlu0 %481
      %483 = vrot.lane.b32.xlu0 %v448, 8
      %v484 = vpop.permute.xlu0 %483
      %485 = vrot.lane.b32.xlu0 %v455, 8
      %v486 = vpop.permute.xlu0 %485
      %487 = vrot.lane.b32.xlu0 %v462, 8
      %v488 = vpop.permute.xlu0 %487
      %489 = vrot.lane.b32.xlu0 %v469, 8
      %v490 = vpop.permute.xlu0 %489
      %491 = vrot.lane.b32.xlu0 %v476, 8
      %v492 = vpop.permute.xlu0 %491
      %v501 = vrot.slane %v411, 1
      %v502 = vrot.slane %v412, 1
      %v503 = vrot.slane %v413, 1
      %v504 = vrot.slane %v414, 1
      %v505 = vrot.slane %v415, 1
      %v506 = vrot.slane %v416, 1
      %v507 = vrot.slane %v417, 1
      %v508 = vrot.slane %v418, 1
      %509 = vrot.lane.b32.xlu0 %v501, 16
      %v510 = vpop.permute.xlu0 %509
      %511 = vrot.lane.b32.xlu0 %v502, 16
      %v512 = vpop.permute.xlu0 %511
      %513 = vrot.lane.b32.xlu0 %v503, 16
      %v514 = vpop.permute.xlu0 %513
      %515 = vrot.lane.b32.xlu0 %v504, 16
      %v516 = vpop.permute.xlu0 %515
      %517 = vrot.lane.b32.xlu0 %v505, 16
      %v518 = vpop.permute.xlu0 %517
      %519 = vrot.lane.b32.xlu0 %v506, 16
      %v520 = vpop.permute.xlu0 %519
      %521 = vrot.lane.b32.xlu0 %v507, 16
      %v522 = vpop.permute.xlu0 %521
      %523 = vrot.lane.b32.xlu0 %v508, 16
      %v524 = vpop.permute.xlu0 %523
      %526 = vrot.lane.b32.xlu0 %v412, 24
      %v527 = vpop.permute.xlu0 %526
      %528 = vrot.lane.b32.xlu0 %v413, 24
      %v529 = vpop.permute.xlu0 %528
      %530 = vrot.lane.b32.xlu0 %v414, 24
      %v531 = vpop.permute.xlu0 %530
      %532 = vrot.lane.b32.xlu0 %v415, 24
      %v533 = vpop.permute.xlu0 %532
      %534 = vrot.lane.b32.xlu0 %v416, 24
      %v535 = vpop.permute.xlu0 %534
      %536 = vrot.lane.b32.xlu0 %v417, 24
      %v537 = vpop.permute.xlu0 %536
      %538 = vrot.lane.b32.xlu0 %v418, 24
      %v539 = vpop.permute.xlu0 %538
      %540 = vrot.lane.b32.xlu0 %v419, 24
      %v541 = vpop.permute.xlu0 %540
      %v543 = vshrl.u32 %v419, 16
      %v545 = vshll.u32 %v419, 16
      %v547 = vrot.slane %v545, 1
      %v548 = vor.u32 %v543, %v547
      %549 = vrot.lane.b32.xlu0 %v434, 32
      %v550 = vpop.permute.xlu0 %549
      %551 = vrot.lane.b32.xlu0 %v441, 32
      %v552 = vpop.permute.xlu0 %551
      %553 = vrot.lane.b32.xlu0 %v448, 32
      %v554 = vpop.permute.xlu0 %553
      %555 = vrot.lane.b32.xlu0 %v455, 32
      %v556 = vpop.permute.xlu0 %555
      %557 = vrot.lane.b32.xlu0 %v462, 32
      %v558 = vpop.permute.xlu0 %557
      %559 = vrot.lane.b32.xlu0 %v469, 32
      %v560 = vpop.permute.xlu0 %559
      %561 = vrot.lane.b32.xlu0 %v476, 32
      %v562 = vpop.permute.xlu0 %561
      %563 = vrot.lane.b32.xlu0 %v548, 32
      %v564 = vpop.permute.xlu0 %563
      %v565 = vrot.slane %v419, 1
      %566 = vrot.lane.b32.xlu0 %v502, 40
      %v567 = vpop.permute.xlu0 %566
      %568 = vrot.lane.b32.xlu0 %v503, 40
      %v569 = vpop.permute.xlu0 %568
      %570 = vrot.lane.b32.xlu0 %v504, 40
      %v571 = vpop.permute.xlu0 %570
      %572 = vrot.lane.b32.xlu0 %v505, 40
      %v573 = vpop.permute.xlu0 %572
      %574 = vrot.lane.b32.xlu0 %v506, 40
      %v575 = vpop.permute.xlu0 %574
      %576 = vrot.lane.b32.xlu0 %v507, 40
      %v577 = vpop.permute.xlu0 %576
      %578 = vrot.lane.b32.xlu0 %v508, 40
      %v579 = vpop.permute.xlu0 %578
      %580 = vrot.lane.b32.xlu0 %v565, 40
      %v581 = vpop.permute.xlu0 %580
      %583 = vrot.lane.b32.xlu0 %v413, 48
      %v584 = vpop.permute.xlu0 %583
      %585 = vrot.lane.b32.xlu0 %v414, 48
      %v586 = vpop.permute.xlu0 %585
      %587 = vrot.lane.b32.xlu0 %v415, 48
      %v588 = vpop.permute.xlu0 %587
      %589 = vrot.lane.b32.xlu0 %v416, 48
      %v590 = vpop.permute.xlu0 %589
      %591 = vrot.lane.b32.xlu0 %v417, 48
      %v592 = vpop.permute.xlu0 %591
      %593 = vrot.lane.b32.xlu0 %v418, 48
      %v594 = vpop.permute.xlu0 %593
      %595 = vrot.lane.b32.xlu0 %v419, 48
      %v596 = vpop.permute.xlu0 %595
      %597 = vrot.lane.b32.xlu0 %v420, 48
      %v598 = vpop.permute.xlu0 %597
      %v600 = vshrl.u32 %v420, 16
      %v602 = vshll.u32 %v420, 16
      %v604 = vrot.slane %v602, 1
      %v605 = vor.u32 %v600, %v604
      %606 = vrot.lane.b32.xlu0 %v441, 56
      %v607 = vpop.permute.xlu0 %606
      %608 = vrot.lane.b32.xlu0 %v448, 56
      %v609 = vpop.permute.xlu0 %608
      %610 = vrot.lane.b32.xlu0 %v455, 56
      %v611 = vpop.permute.xlu0 %610
      %612 = vrot.lane.b32.xlu0 %v462, 56
      %v613 = vpop.permute.xlu0 %612
      %614 = vrot.lane.b32.xlu0 %v469, 56
      %v615 = vpop.permute.xlu0 %614
      %616 = vrot.lane.b32.xlu0 %v476, 56
      %v617 = vpop.permute.xlu0 %616
      %618 = vrot.lane.b32.xlu0 %v548, 56
      %v619 = vpop.permute.xlu0 %618
      %620 = vrot.lane.b32.xlu0 %v605, 56
      %v621 = vpop.permute.xlu0 %620
      %v622 = vrot.slane %v420, 1
      %623 = vrot.lane.b32.xlu0 %v503, 64
      %v624 = vpop.permute.xlu0 %623
      %625 = vrot.lane.b32.xlu0 %v504, 64
      %v626 = vpop.permute.xlu0 %625
      %627 = vrot.lane.b32.xlu0 %v505, 64
      %v628 = vpop.permute.xlu0 %627
      %629 = vrot.lane.b32.xlu0 %v506, 64
      %v630 = vpop.permute.xlu0 %629
      %631 = vrot.lane.b32.xlu0 %v507, 64
      %v632 = vpop.permute.xlu0 %631
      %633 = vrot.lane.b32.xlu0 %v508, 64
      %v634 = vpop.permute.xlu0 %633
      %635 = vrot.lane.b32.xlu0 %v565, 64
      %v636 = vpop.permute.xlu0 %635
      %637 = vrot.lane.b32.xlu0 %v622, 64
      %v638 = vpop.permute.xlu0 %637
      %vm639 = vcmask 64512
      %v641 = vsel %vm639, %v411, %v478
      %v643 = vsel %vm639, %v412, %v480
      %v645 = vsel %vm639, %v413, %v482
      %v647 = vsel %vm639, %v414, %v484
      %v649 = vsel %vm639, %v415, %v486
      %v651 = vsel %vm639, %v416, %v488
      %v653 = vsel %vm639, %v417, %v490
      %v655 = vsel %vm639, %v418, %v492
      %vm656 = vcmask 130048
      %v658 = vsel %vm656, %v641, %v510
      %v660 = vsel %vm656, %v643, %v512
      %v662 = vsel %vm656, %v645, %v514
      %v664 = vsel %vm656, %v647, %v516
      %v666 = vsel %vm656, %v649, %v518
      %v668 = vsel %vm656, %v651, %v520
      %v670 = vsel %vm656, %v653, %v522
      %v672 = vsel %vm656, %v655, %v524
      %vm673 = vcmask 195584
      %v675 = vsel %vm673, %v658, %v527
      %v677 = vsel %vm673, %v660, %v529
      %v679 = vsel %vm673, %v662, %v531
      %v681 = vsel %vm673, %v664, %v533
      %v683 = vsel %vm673, %v666, %v535
      %v685 = vsel %vm673, %v668, %v537
      %v687 = vsel %vm673, %v670, %v539
      %v689 = vsel %vm673, %v672, %v541
      %vm690 = vcmask 261120
      %v692 = vsel %vm690, %v675, %v550
      %v694 = vsel %vm690, %v677, %v552
      %v696 = vsel %vm690, %v679, %v554
      %v698 = vsel %vm690, %v681, %v556
      %v700 = vsel %vm690, %v683, %v558
      %v702 = vsel %vm690, %v685, %v560
      %v704 = vsel %vm690, %v687, %v562
      %v706 = vsel %vm690, %v689, %v564
      %vm707 = vcmask 326656
      %v709 = vsel %vm707, %v692, %v567
      %v711 = vsel %vm707, %v694, %v569
      %v713 = vsel %vm707, %v696, %v571
      %v715 = vsel %vm707, %v698, %v573
      %v717 = vsel %vm707, %v700, %v575
      %v719 = vsel %vm707, %v702, %v577
      %v721 = vsel %vm707, %v704, %v579
      %v723 = vsel %vm707, %v706, %v581
      %vm724 = vcmask 392192
      %v726 = vsel %vm724, %v709, %v584
      %v728 = vsel %vm724, %v711, %v586
      %v730 = vsel %vm724, %v713, %v588
      %v732 = vsel %vm724, %v715, %v590
      %v734 = vsel %vm724, %v717, %v592
      %v736 = vsel %vm724, %v719, %v594
      %v738 = vsel %vm724, %v721, %v596
      %v740 = vsel %vm724, %v723, %v598
      %vm741 = vcmask 457728
      %v743 = vsel %vm741, %v726, %v607
      %v745 = vsel %vm741, %v728, %v609
      %v747 = vsel %vm741, %v730, %v611
      %v749 = vsel %vm741, %v732, %v613
      %v751 = vsel %vm741, %v734, %v615
      %v753 = vsel %vm741, %v736, %v617
      %v755 = vsel %vm741, %v738, %v619
      %v757 = vsel %vm741, %v740, %v621
      %vm758 = vcmask 523264
      %v760 = vsel %vm758, %v743, %v624
      %v762 = vsel %vm758, %v745, %v626
      %v764 = vsel %vm758, %v747, %v628
      %v766 = vsel %vm758, %v749, %v630
      %v768 = vsel %vm758, %v751, %v632
      %v770 = vsel %vm758, %v753, %v634
      %v772 = vsel %vm758, %v755, %v636
      %v774 = vsel %vm758, %v757, %v638
      %v775 = vld [vmem:[%s1] sm:$0xf]
      %v776 = vld [vmem:[%s1 + $0x4] sm:$0xf]
      %v777 = vld [vmem:[%s1 + $0x8] sm:$0xf]
      %v778 = vld [vmem:[%s1 + $0xc] sm:$0xf]
      %v779 = vld [vmem:[%s1 + $0x10] sm:$0xf]
      %v780 = vld [vmem:[%s1 + $0x14] sm:$0xf]
      %v781 = vld [vmem:[%s1 + $0x18] sm:$0xf]
      %v782 = vld [vmem:[%s1 + $0x1c] sm:$0xf]
      %v783 = vld [vmem:[%s1 + $0x20] sm:$0xf]
      %v784 = vld [vmem:[%s2] sm:$0x1]
      %v786 = vlaneseq
      %v787 = vshrl.u32 %v786, 7
      %v788 = vsub.s32 0, %v787
      %v789 = vrot.slane %v784, %v788
      %v799 = vunpack.c.l.b16 %v760
      %v800 = vunpack.c.l.b16 %v762
      %v801 = vunpack.c.l.b16 %v764
      %v802 = vunpack.c.l.b16 %v766
      %v803 = vunpack.c.l.b16 %v768
      %v804 = vunpack.c.l.b16 %v770
      %v805 = vunpack.c.l.b16 %v772
      %v806 = vunpack.c.l.b16 %v774
      %v807 = vpack.c.b16 %v800, %v799
      %v808 = vpack.c.b16 %v802, %v801
      %v809 = vpack.c.b16 %v804, %v803
      %v810 = vpack.c.b16 %v806, %v805
      %v820 = vunpack.c.l.b16 %v775
      %v821 = vunpack.c.l.b16 %v776
      %v822 = vunpack.c.l.b16 %v777
      %v823 = vunpack.c.l.b16 %v778
      %v824 = vunpack.c.l.b16 %v779
      %v825 = vunpack.c.l.b16 %v780
      %v826 = vunpack.c.l.b16 %v781
      %v827 = vunpack.c.l.b16 %v782
      %v828 = vunpack.c.l.b16 %v783
      %v829 = vpack.c.b16 %v821, %v820
      %v830 = vpack.c.b16 %v823, %v822
      %v831 = vpack.c.b16 %v825, %v824
      %v832 = vpack.c.b16 %v827, %v826
      %v833 = vpack.c.b16 %v828, %v828
      %vm838 = vcmask 588800
      %v840 = vsel %vm838, %v807, 0
      %v843 = vsel %vm838, %v808, 0
      %v846 = vsel %vm838, %v809, 0
      %v849 = vsel %vm838, %v810, 0
      %vm851 = vcmask 1043456
      %v853 = vsel %vm851, %v833, 0
      %855 = vmatprep.subr.bf16.mxu0 0
      %856 = vmatpush1.bf16.msra.mxu0 %v829
      %857 = vmatprep.subr.bf16.mxu0 0
      %858 = vmatpush1.bf16.msra.mxu0 %v830
      %859 = vmatprep.subr.bf16.mxu0 0
      %860 = vmatpush1.bf16.msra.mxu0 %v831
      %861 = vmatprep.subr.bf16.mxu0 0
      %862 = vmatpush1.bf16.msra.mxu0 %v832
      %863 = vmatprep.subr.bf16.mxu0 0
      %864 = vmatpush1.bf16.msra.mxu0 %v853
      %865 = vmatprep.subr.bf16.mxu0 0
      %866 = vmatpush1.bf16.msra.mxu0 0
      %867 = vmatprep.subr.bf16.mxu0 0
      %868 = vmatpush1.bf16.msra.mxu0 0
      %869 = vmatprep.subr.bf16.mxu0 0
      %870 = vmatpush1.bf16.msra.mxu0 0
      %871 = vmatprep.subr.bf16.mxu0 0
      %872 = vmatpush1.bf16.msra.mxu0 0
      %873 = vmatprep.subr.bf16.mxu0 0
      %874 = vmatpush1.bf16.msra.mxu0 0
      %875 = vmatprep.subr.bf16.mxu0 0
      %876 = vmatpush1.bf16.msra.mxu0 0
      %877 = vmatprep.subr.bf16.mxu0 0
      %878 = vmatpush1.bf16.msra.mxu0 0
      %879 = vmatprep.subr.bf16.mxu0 0
      %880 = vmatpush1.bf16.msra.mxu0 0
      %881 = vmatprep.subr.bf16.mxu0 0
      %882 = vmatpush1.bf16.msra.mxu0 0
      %883 = vmatprep.subr.bf16.mxu0 0
      %884 = vmatpush1.bf16.msra.mxu0 0
      %885 = vmatprep.subr.bf16.mxu0 0
      %886 = vmatpush1.bf16.msra.mxu0 0
      %887 = vmatprep.mubr.bf16.mxu0 0
      %888 = vmatmul.mubr.bf16.gmra.mrb[0].mxu0 %v840
      %v889 = vpop.f32.mrb[0].mxu0
      %v890 = vadd.f32 %v789, %v889
      %v891 = vpop.f32.mrb[0].mxu0
      %v892 = vpop.f32.mrb[0].mxu0
      %v893 = vadd.f32 %v789, %v892
      %v894 = vpop.f32.mrb[0].mxu0
      %895 = vmatprep.mubr.bf16.mxu0 0
      %896 = vmatmul.mubr.bf16.gmra.mrb[0].mxu0 %v843
      %v897 = vpop.f32.mrb[0].mxu0
      %v898 = vadd.f32 %v789, %v897
      %v899 = vpop.f32.mrb[0].mxu0
      %v900 = vpop.f32.mrb[0].mxu0
      %v901 = vadd.f32 %v789, %v900
      %v902 = vpop.f32.mrb[0].mxu0
      %903 = vmatprep.mubr.bf16.mxu0 0
      %904 = vmatmul.mubr.bf16.gmra.mrb[0].mxu0 %v846
      %v905 = vpop.f32.mrb[0].mxu0
      %v906 = vadd.f32 %v789, %v905
      %v907 = vpop.f32.mrb[0].mxu0
      %v908 = vpop.f32.mrb[0].mxu0
      %v909 = vadd.f32 %v789, %v908
      %v910 = vpop.f32.mrb[0].mxu0
      %911 = vmatprep.mubr.bf16.mxu0 0
      %912 = vmatmul.mubr.bf16.gmra.mrb[0].mxu0 %v849
      %v913 = vpop.f32.mrb[0].mxu0
      %v914 = vadd.f32 %v789, %v913
      %v915 = vpop.f32.mrb[0].mxu0
      %v916 = vpop.f32.mrb[0].mxu0
      %v917 = vadd.f32 %v789, %v916
      %v918 = vpop.f32.mrb[0].mxu0
      %919 = vdwg.mxu0
      %v920 = vpack.c.bf16 %v893, %v890
      %v921 = vpack.c.bf16 %v901, %v898
      %v922 = vpack.c.bf16 %v909, %v906
      %v923 = vpack.c.bf16 %v917, %v914
      %v928 = vunpack.c.l.b16 %v920
      %v929 = vunpack.c.h.b16 %v920
      %v930 = vunpack.c.l.b16 %v921
      %v931 = vunpack.c.h.b16 %v921
      %v932 = vunpack.c.l.b16 %v922
      %v933 = vunpack.c.h.b16 %v922
      %v934 = vunpack.c.l.b16 %v923
      %v935 = vunpack.c.h.b16 %v923
      %v936 = vpack.c.b16 %v928, %v928
      %v937 = vpack.c.b16 %v929, %v929
      %v938 = vpack.c.b16 %v930, %v930
      %v939 = vpack.c.b16 %v931, %v931
      %v940 = vpack.c.b16 %v932, %v932
      %v941 = vpack.c.b16 %v933, %v933
      %v942 = vpack.c.b16 %v934, %v934
      %v943 = vpack.c.b16 %v935, %v935
      %vm952 = vcmask 60416
      %953 = vst.msk [vmem:[%s289] sm:$0xf] %vm952, %v936
      %954 = vst.msk [vmem:[%s289 + $0x4] sm:$0xf] %vm952, %v937
      %955 = vst.msk [vmem:[%s289 + $0x8] sm:$0xf] %vm952, %v938
      %956 = vst.msk [vmem:[%s289 + $0xc] sm:$0xf] %vm952, %v939
      %957 = vst.msk [vmem:[%s289 + $0x10] sm:$0xf] %vm952, %v940
      %958 = vst.msk [vmem:[%s289 + $0x14] sm:$0xf] %vm952, %v941
      %959 = vst.msk [vmem:[%s289 + $0x18] sm:$0xf] %vm952, %v942
      %960 = vst.msk [vmem:[%s289 + $0x1c] sm:$0xf] %vm952, %v943
      %v961 = vunpack.c.l.bf16 %v920
      %v962 = vunpack.c.h.bf16 %v920
      %v963 = vunpack.c.l.bf16 %v921
      %v964 = vunpack.c.h.bf16 %v921
      %v965 = vunpack.c.l.bf16 %v922
      %v966 = vunpack.c.h.bf16 %v922
      %v967 = vunpack.c.l.bf16 %v923
      %v968 = vunpack.c.h.bf16 %v923
      %v969 = vsel %vm639, %v961, 0.0
      %v970 = vsel %vm639, %v962, 0.0
      %v971 = vadd.f32 %v969, %v970
      %v972 = vsel %vm639, %v963, 0.0
      %v973 = vadd.f32 %v971, %v972
      %v974 = vsel %vm639, %v964, 0.0
      %v975 = vadd.f32 %v973, %v974
      %v976 = vsel %vm639, %v965, 0.0
      %v977 = vadd.f32 %v975, %v976
      %v978 = vsel %vm639, %v966, 0.0
      %v979 = vadd.f32 %v977, %v978
      %v980 = vsel %vm639, %v967, 0.0
      %v981 = vadd.f32 %v979, %v980
      %v982 = vsel %vm639, %v968, 0.0
      %v983 = vadd.f32 %v981, %v982
      %v984 = vrot.slane %v983, 4
      %v985 = vadd.f32 %v983, %v984
      %v986 = vrot.slane %v985, 2
      %v987 = vadd.f32 %v985, %v986
      %v988 = vrot.slane %v987, 1
      %v989 = vadd.f32 %v987, %v988
      %v990 = vmul.f32 %v989, 0.015625
      %v991 = vsub.f32 %v961, %v990
      %v992 = vsub.f32 %v962, %v990
      %v993 = vsub.f32 %v963, %v990
      %v994 = vsub.f32 %v964, %v990
      %v995 = vsub.f32 %v965, %v990
      %v996 = vsub.f32 %v966, %v990
      %v997 = vsub.f32 %v967, %v990
      %v998 = vsub.f32 %v968, %v990
      %vm999 = vcmask 57344
      %1000 = vst.msk [vmem:[%s292] sm:$0x1] %vm999, %v989
      %v1001 = vmul.f32 %v991, %v991
      %v1002 = vmul.f32 %v992, %v992
      %v1003 = vmul.f32 %v993, %v993
      %v1004 = vmul.f32 %v994, %v994
      %v1005 = vmul.f32 %v995, %v995
      %v1006 = vmul.f32 %v996, %v996
      %v1007 = vmul.f32 %v997, %v997
      %v1008 = vmul.f32 %v998, %v998
      %v1009 = vsel %vm639, %v1001, 0.0
      %v1010 = vsel %vm639, %v1002, 0.0
      %v1011 = vadd.f32 %v1009, %v1010
      %v1012 = vsel %vm639, %v1003, 0.0
      %v1013 = vadd.f32 %v1011, %v1012
      %v1014 = vsel %vm639, %v1004, 0.0
      %v1015 = vadd.f32 %v1013, %v1014
      %v1016 = vsel %vm639, %v1005, 0.0
      %v1017 = vadd.f32 %v1015, %v1016
      %v1018 = vsel %vm639, %v1006, 0.0
      %v1019 = vadd.f32 %v1017, %v1018
      %v1020 = vsel %vm639, %v1007, 0.0
      %v1021 = vadd.f32 %v1019, %v1020
      %v1022 = vsel %vm639, %v1008, 0.0
      %v1023 = vadd.f32 %v1021, %v1022
      %v1024 = vrot.slane %v1023, 4
      %v1025 = vadd.f32 %v1023, %v1024
      %v1026 = vrot.slane %v1025, 2
      %v1027 = vadd.f32 %v1025, %v1026
      %v1028 = vrot.slane %v1027, 1
      %v1029 = vadd.f32 %v1027, %v1028
      %1030 = vst.msk [vmem:[%s295] sm:$0x1] %vm999, %v1029
      %p1031 = scmp.lt.s32.totalorder %s19, 1
      %s1032 = scalar_select %p1031, %s19, 1
      %s1033 = smul.addr %s1032, 8
      %s1034 = smul.addr %s1033, 4
      %s1035 = scalar_lea.vmem %s5, %s1034
      %p1036 = scmp.lt.s32.totalorder %s19, 1
      %s1037 = scalar_select %p1036, %s19, 1
      %s1038 = scalar_lea.vmem %s6, %s1037
      %p1039 = scmp.lt.s32.totalorder %s19, 1
      %s1040 = scalar_select %p1039, %s19, 1
      %s1041 = scalar_lea.vmem %s7, %s1040
      // Predicated region
      $region41: #{resnet_block_forward.4} parent=39 // pred_check
        %p1042 = pneg %p147
      $region42: #{resnet_block_forward.4} parent=39 // pred_check_branch
        %1044 = sbr.rel (%p1042) target = $region44
      $region43: #{resnet_block_forward.4} parent=39 // pred_region
        _
      $region44: #{resnet_block_forward.4} parent=39 // pred_fallthru
        _
      // Predicated region
      $region45: #{resnet_block_forward.4} parent=39 // pred_check
        %p1045 = pneg %p173
      $region46: #{resnet_block_forward.4} parent=39 // pred_check_branch
        %1047 = sbr.rel (%p1045) target = $region48
      $region47: #{resnet_block_forward.4} parent=39 // pred_region
        _
      $region48: #{resnet_block_forward.4} parent=39 // pred_fallthru
        _
      // Predicated region
      $region49: #{resnet_block_forward.4} parent=39 // pred_check
        %p1048 = pneg %p199
      $region50: #{resnet_block_forward.4} parent=39 // pred_check_branch
        %1050 = sbr.rel (%p1048) target = $region52
      $region51: #{resnet_block_forward.4} parent=39 // pred_region
        _
      $region52: #{resnet_block_forward.4} parent=39 // pred_fallthru
        _
    $region40: #{resnet_block_forward.4} parent=5 // pred_fallthru
      _
    %p1051 = scmp.le.s32.totalorder 2, %s14
    // Predicated region
    $region53: #{resnet_block_forward.4} parent=5 // pred_check
      %p1052 = pneg %p1051
    $region54: #{resnet_block_forward.4} parent=5 // pred_check_branch
      %1054 = sbr.rel (%p1052) target = $region56
    $region55: #{resnet_block_forward.4} parent=5 // pred_region
      %s1055 = ssub.s32 %s14, 2
      // Predicated region
      $region57: #{resnet_block_forward.4} parent=55 // pred_check
        %p1056 = pneg %p153
      $region58: #{resnet_block_forward.4} parent=55 // pred_check_branch
        %1058 = sbr.rel (%p1056) target = $region60
      $region59: #{resnet_block_forward.4} parent=55 // pred_region
        %p1059 = scmp.lt.s32.totalorder %s20, 1
        %s1060 = scalar_select %p1059, %s20, 1
        %s1061 = smul.addr %s1060, 8
        %s1062 = smul.addr %s1061, 4
        %s1063 = scalar_lea.vmem %s5, %s1062
      $region60: #{resnet_block_forward.4} parent=55 // pred_fallthru
        _
      // Predicated region
      $region61: #{resnet_block_forward.4} parent=55 // pred_check
        %p1064 = pneg %p179
      $region62: #{resnet_block_forward.4} parent=55 // pred_check_branch
        %1066 = sbr.rel (%p1064) target = $region64
      $region63: #{resnet_block_forward.4} parent=55 // pred_region
        %p1067 = scmp.lt.s32.totalorder %s20, 1
        %s1068 = scalar_select %p1067, %s20, 1
        %s1069 = scalar_lea.vmem %s6, %s1068
      $region64: #{resnet_block_forward.4} parent=55 // pred_fallthru
        _
      // Predicated region
      $region65: #{resnet_block_forward.4} parent=55 // pred_check
        %p1070 = pneg %p205
      $region66: #{resnet_block_forward.4} parent=55 // pred_check_branch
        %1072 = sbr.rel (%p1070) target = $region68
      $region67: #{resnet_block_forward.4} parent=55 // pred_region
        %p1073 = scmp.lt.s32.totalorder %s20, 1
        %s1074 = scalar_select %p1073, %s20, 1
        %s1075 = scalar_lea.vmem %s7, %s1074
      $region68: #{resnet_block_forward.4} parent=55 // pred_fallthru
        _
    $region56: #{resnet_block_forward.4} parent=5 // pred_fallthru
      _
  $region6: #{resnet_block_forward.4} parent=0 // loop_footer
    %s18 = sadd.s32 1, %s14
  $region7: #{resnet_block_forward.4} parent=0 // loop_footer_branch
    %13 = sbr.rel target = $region3
  $region8: #{resnet_block_forward.4} parent=0 // loop_exit
    _

// kernel: resnet_block_forward.3
$region0: #{resnet_block_forward.3}
  #allocation0 [shape = 'u32[]', space=smem, size = 0x4, offset = 0x4, fixed_abs, tag = 'smem constant byte address 0x4 - core index']
  #allocation1 [shape = 'u32[144,128]{1,0:T(1,128)}', space=vmem, size = 0x12000, scoped, tag = 'internal scratch']
  %s0 = inlined_call_operand.vmem [shape: bf16[2,18,18,4], index: 0, kind: input, shape index: {}]
  %s1 = inlined_call_operand.vmem [shape: bf16[36,8], index: 1, kind: input, shape index: {}]
  %s2 = inlined_call_operand.vmem [shape: f32[1,8], index: 2, kind: input, shape index: {}]
  %s3 = inlined_call_operand.vmem [shape: f32[1,4], index: 3, kind: input, shape index: {}]
  %s4 = inlined_call_operand.vmem [shape: f32[1,4], index: 4, kind: input, shape index: {}]
  %s5 = inlined_call_operand.vmem [shape: bf16[2,64,8], index: 5, kind: output, shape index: {0}]
  %s6 = inlined_call_operand.vmem [shape: f32[2,1,8], index: 6, kind: output, shape index: {1}]
  %s7 = inlined_call_operand.vmem [shape: f32[2,1,8], index: 7, kind: output, shape index: {2}]
  %8 = xla_tuple %s5, %s6, %s7
  %s9 = sld [smem:[#allocation0]]
  $region69: #{resnet_block_forward.3} parent=0
    _
  %s11 = ssub.s32 1, %s9
  %s12 = scalar_select 0, %s11, %s9
  loop: start=0, step=1, limit=4
  $region2: #{resnet_block_forward.3} parent=0 // loop_pre_header
    _
  $region3: #{resnet_block_forward.3} parent=0 // loop_header
    %s14 = sphi 0, %s18
    %p15 = scmp.ge.s32.totalorder %s14, 4
    %s24 = sphi 0, %s26
    %s27 = sphi 0, %s24
    %s28 = sphi 0, %s27
    %s44 = sphi 0, %s28
    %s48 = sphi 0, %s48
    %s50 = sphi 0, %s48
    %s51 = sphi 0, %s50
    %s65 = sphi 0, %s51
    %s69 = sphi 0, %s69
    %s71 = sphi 0, %s69
    %s72 = sphi 0, %s71
    %s86 = sphi 0, %s72
    %s90 = sphi 0, %s90
    %s92 = sphi 0, %s90
    %s93 = sphi 0, %s92
    %s107 = sphi 0, %s93
    %s111 = sphi 0, %s111
    %s113 = sphi 0, %s111
    %s114 = sphi 0, %s113
    %s128 = sphi 0, %s114
    %s134 = sphi 0, %s136
    %s137 = sphi 0, %s134
    %s138 = sphi 0, %s137
    %s154 = sphi 0, %s138
    %s160 = sphi 0, %s162
    %s163 = sphi 0, %s160
    %s164 = sphi 0, %s163
    %s180 = sphi 0, %s164
    %s186 = sphi 0, %s188
    %s189 = sphi 0, %s186
    %s190 = sphi 0, %s189
    %s206 = sphi 0, %s190
  $region4: #{resnet_block_forward.3} parent=0 // loop_header_branch
    %17 = sbr.rel (%p15) target = $region8
  $region5: #{resnet_block_forward.3} parent=0 // loop_body
    %s19 = ssub.s32 %s14, 1
    %s20 = ssub.s32 %s14, 2
    %s21 = sadd.s32 %s14, 1
    %s22 = ssub.s32 %s14, %s21
    %p23 = scmp.eq.s32.totalorder %s22, 0
    %s25 = sadd.s32 %s24, 1
    %s26 = scalar_select %p23, %s24, %s25
    %p29 = pneg %p23
    %p30 = scmp.eq.s32.totalorder %s14, 1
    %p31 = por %p29, %p30
    %p32 = scmp.ne.s32.totalorder %s24, %s27
    %p33 = scmp.eq.s32.totalorder %s14, 0
    %p34 = por %p32, %p33
    %p35 = scmp.ne.s32.totalorder %s24, %s27
    %p36 = scmp.eq.s32.totalorder %s19, 1
    %p37 = por %p35, %p36
    %p38 = scmp.ne.s32.totalorder %s27, %s28
    %p39 = scmp.eq.s32.totalorder %s19, 0
    %p40 = por %p38, %p39
    %p41 = scmp.ne.s32.totalorder %s27, %s28
    %p42 = scmp.eq.s32.totalorder %s20, 1
    %p43 = por %p41, %p42
    %p45 = scmp.ne.s32.totalorder %s28, %s44
    %p46 = scmp.eq.s32.totalorder %s20, 0
    %p47 = por %p45, %p46
    %s49 = sadd.s32 %s48, 1
    %p52 = scmp.eq.s32.totalorder %s14, 1
    %p53 = scmp.ne.s32.totalorder %s48, %s50
    %p54 = scmp.eq.s32.totalorder %s14, 0
    %p55 = por %p53, %p54
    %p56 = scmp.ne.s32.totalorder %s48, %s50
    %p57 = scmp.eq.s32.totalorder %s19, 1
    %p58 = por %p56, %p57
    %p59 = scmp.ne.s32.totalorder %s50, %s51
    %p60 = scmp.eq.s32.totalorder %s19, 0
    %p61 = por %p59, %p60
    %p62 = scmp.ne.s32.totalorder %s50, %s51
    %p63 = scmp.eq.s32.totalorder %s20, 1
    %p64 = por %p62, %p63
    %p66 = scmp.ne.s32.totalorder %s51, %s65
    %p67 = scmp.eq.s32.totalorder %s20, 0
    %p68 = por %p66, %p67
    %s70 = sadd.s32 %s69, 1
    %p73 = scmp.eq.s32.totalorder %s14, 1
    %p74 = scmp.ne.s32.totalorder %s69, %s71
    %p75 = scmp.eq.s32.totalorder %s14, 0
    %p76 = por %p74, %p75
    %p77 = scmp.ne.s32.totalorder %s69, %s71
    %p78 = scmp.eq.s32.totalorder %s19, 1
    %p79 = por %p77, %p78
    %p80 = scmp.ne.s32.totalorder %s71, %s72
    %p81 = scmp.eq.s32.totalorder %s19, 0
    %p82 = por %p80, %p81
    %p83 = scmp.ne.s32.totalorder %s71, %s72
    %p84 = scmp.eq.s32.totalorder %s20, 1
    %p85 = por %p83, %p84
    %p87 = scmp.ne.s32.totalorder %s72, %s86
    %p88 = scmp.eq.s32.totalorder %s20, 0
    %p89 = por %p87, %p88
    %s91 = sadd.s32 %s90, 1
    %p94 = scmp.eq.s32.totalorder %s14, 1
    %p95 = scmp.ne.s32.totalorder %s90, %s92
    %p96 = scmp.eq.s32.totalorder %s14, 0
    %p97 = por %p95, %p96
    %p98 = scmp.ne.s32.totalorder %s90, %s92
    %p99 = scmp.eq.s32.totalorder %s19, 1
    %p100 = por %p98, %p99
    %p101 = scmp.ne.s32.totalorder %s92, %s93
    %p102 = scmp.eq.s32.totalorder %s19, 0
    %p103 = por %p101, %p102
    %p104 = scmp.ne.s32.totalorder %s92, %s93
    %p105 = scmp.eq.s32.totalorder %s20, 1
    %p106 = por %p104, %p105
    %p108 = scmp.ne.s32.totalorder %s93, %s107
    %p109 = scmp.eq.s32.totalorder %s20, 0
    %p110 = por %p108, %p109
    %s112 = sadd.s32 %s111, 1
    %p115 = scmp.eq.s32.totalorder %s14, 1
    %p116 = scmp.ne.s32.totalorder %s111, %s113
    %p117 = scmp.eq.s32.totalorder %s14, 0
    %p118 = por %p116, %p117
    %p119 = scmp.ne.s32.totalorder %s111, %s113
    %p120 = scmp.eq.s32.totalorder %s19, 1
    %p121 = por %p119, %p120
    %p122 = scmp.ne.s32.totalorder %s113, %s114
    %p123 = scmp.eq.s32.totalorder %s19, 0
    %p124 = por %p122, %p123
    %p125 = scmp.ne.s32.totalorder %s113, %s114
    %p126 = scmp.eq.s32.totalorder %s20, 1
    %p127 = por %p125, %p126
    %p129 = scmp.ne.s32.totalorder %s114, %s128
    %p130 = scmp.eq.s32.totalorder %s20, 0
    %p131 = por %p129, %p130
    %s132 = ssub.s32 %s14, %s21
    %p133 = scmp.eq.s32.totalorder %s132, 0
    %s135 = sadd.s32 %s134, 1
    %s136 = scalar_select %p133, %s134, %s135
    %p139 = pneg %p133
    %p140 = scmp.eq.s32.totalorder %s14, 1
    %p141 = por %p139, %p140
    %p142 = scmp.ne.s32.totalorder %s134, %s137
    %p143 = scmp.eq.s32.totalorder %s14, 0
    %p144 = por %p142, %p143
    %p145 = scmp.ne.s32.totalorder %s134, %s137
    %p146 = scmp.eq.s32.totalorder %s19, 1
    %p147 = por %p145, %p146
    %p148 = scmp.ne.s32.totalorder %s137, %s138
    %p149 = scmp.eq.s32.totalorder %s19, 0
    %p150 = por %p148, %p149
    %p151 = scmp.ne.s32.totalorder %s137, %s138
    %p152 = scmp.eq.s32.totalorder %s20, 1
    %p153 = por %p151, %p152
    %p155 = scmp.ne.s32.totalorder %s138, %s154
    %p156 = scmp.eq.s32.totalorder %s20, 0
    %p157 = por %p155, %p156
    %s158 = ssub.s32 %s14, %s21
    %p159 = scmp.eq.s32.totalorder %s158, 0
    %s161 = sadd.s32 %s160, 1
    %s162 = scalar_select %p159, %s160, %s161
    %p165 = pneg %p159
    %p166 = scmp.eq.s32.totalorder %s14, 1
    %p167 = por %p165, %p166
    %p168 = scmp.ne.s32.totalorder %s160, %s163
    %p169 = scmp.eq.s32.totalorder %s14, 0
    %p170 = por %p168, %p169
    %p171 = scmp.ne.s32.totalorder %s160, %s163
    %p172 = scmp.eq.s32.totalorder %s19, 1
    %p173 = por %p171, %p172
    %p174 = scmp.ne.s32.totalorder %s163, %s164
    %p175 = scmp.eq.s32.totalorder %s19, 0
    %p176 = por %p174, %p175
    %p177 = scmp.ne.s32.totalorder %s163, %s164
    %p178 = scmp.eq.s32.totalorder %s20, 1
    %p179 = por %p177, %p178
    %p181 = scmp.ne.s32.totalorder %s164, %s180
    %p182 = scmp.eq.s32.totalorder %s20, 0
    %p183 = por %p181, %p182
    %s184 = ssub.s32 %s14, %s21
    %p185 = scmp.eq.s32.totalorder %s184, 0
    %s187 = sadd.s32 %s186, 1
    %s188 = scalar_select %p185, %s186, %s187
    %p191 = pneg %p185
    %p192 = scmp.eq.s32.totalorder %s14, 1
    %p193 = por %p191, %p192
    %p194 = scmp.ne.s32.totalorder %s186, %s189
    %p195 = scmp.eq.s32.totalorder %s14, 0
    %p196 = por %p194, %p195
    %p197 = scmp.ne.s32.totalorder %s186, %s189
    %p198 = scmp.eq.s32.totalorder %s19, 1
    %p199 = por %p197, %p198
    %p200 = scmp.ne.s32.totalorder %s189, %s190
    %p201 = scmp.eq.s32.totalorder %s19, 0
    %p202 = por %p200, %p201
    %p203 = scmp.ne.s32.totalorder %s189, %s190
    %p204 = scmp.eq.s32.totalorder %s20, 1
    %p205 = por %p203, %p204
    %p207 = scmp.ne.s32.totalorder %s190, %s206
    %p208 = scmp.eq.s32.totalorder %s20, 0
    %p209 = por %p207, %p208
    %p210 = scmp.le.s32.totalorder 1, %s14
    %p211 = scmp.lt.s32.totalorder %s14, 3
    %p212 = pnand %p210, %p211
    %p213 = pneg %p212
    // Predicated region
    $region9: #{resnet_block_forward.3} parent=5 // pred_check
      _
    $region10: #{resnet_block_forward.3} parent=5 // pred_check_branch
      %215 = sbr.rel (%p212) target = $region12
    $region11: #{resnet_block_forward.3} parent=5 // pred_region
      %s216 = ssub.s32 %s14, 1
      // Predicated region
      $region13: #{resnet_block_forward.3} parent=11 // pred_check
        %p217 = pneg %p61
      $region14: #{resnet_block_forward.3} parent=11 // pred_check_branch
        %219 = sbr.rel (%p217) target = $region16
      $region15: #{resnet_block_forward.3} parent=11 // pred_region
        _
      $region16: #{resnet_block_forward.3} parent=11 // pred_fallthru
        _
      // Predicated region
      $region17: #{resnet_block_forward.3} parent=11 // pred_check
        %p220 = pneg %p82
      $region18: #{resnet_block_forward.3} parent=11 // pred_check_branch
        %222 = sbr.rel (%p220) target = $region20
      $region19: #{resnet_block_forward.3} parent=11 // pred_region
        _
      $region20: #{resnet_block_forward.3} parent=11 // pred_fallthru
        _
      // Predicated region
      $region21: #{resnet_block_forward.3} parent=11 // pred_check
        %p223 = pneg %p103
      $region22: #{resnet_block_forward.3} parent=11 // pred_check_branch
        %225 = sbr.rel (%p223) target = $region24
      $region23: #{resnet_block_forward.3} parent=11 // pred_region
        _
      $region24: #{resnet_block_forward.3} parent=11 // pred_fallthru
        _
      // Predicated region
      $region25: #{resnet_block_forward.3} parent=11 // pred_check
        %p226 = pneg %p124
      $region26: #{resnet_block_forward.3} parent=11 // pred_check_branch
        %228 = sbr.rel (%p226) target = $region28
      $region27: #{resnet_block_forward.3} parent=11 // pred_region
        _
      $region28: #{resnet_block_forward.3} parent=11 // pred_fallthru
        _
    $region12: #{resnet_block_forward.3} parent=5 // pred_fallthru
      _
    %p229 = scmp.lt.s32.totalorder %s14, 2
    // Predicated region
    $region29: #{resnet_block_forward.3} parent=5 // pred_check
      %p230 = pneg %p229
    $region30: #{resnet_block_forward.3} parent=5 // pred_check_branch
      %232 = sbr.rel (%p230) target = $region32
    $region31: #{resnet_block_forward.3} parent=5 // pred_region
      // Predicated region
      $region33: #{resnet_block_forward.3} parent=31 // pred_check
        %p233 = pneg %p34
      $region34: #{resnet_block_forward.3} parent=31 // pred_check_branch
        %235 = sbr.rel (%p233) target = $region36
      $region35: #{resnet_block_forward.3} parent=31 // pred_region
        %p236 = scmp.lt.s32.totalorder %s14, 1
        %s237 = scalar_select %p236, %s14, 1
        %s238 = smul.addr %s237, 54
        %s239 = smul.addr %s238, 4
        %s240 = scalar_lea.vmem %s0, %s239
      $region36: #{resnet_block_forward.3} parent=31 // pred_fallthru
        _
    $region32: #{resnet_block_forward.3} parent=5 // pred_fallthru
      _
    %p241 = scmp.le.s32.totalorder 1, %s14
    %p242 = scmp.lt.s32.totalorder %s14, 3
    %p243 = pnand %p241, %p242
    %p244 = pneg %p243
    // Predicated region
    $region37: #{resnet_block_forward.3} parent=5 // pred_check
      _
    $region38: #{resnet_block_forward.3} parent=5 // pred_check_branch
      %246 = sbr.rel (%p243) target = $region40
    $region39: #{resnet_block_forward.3} parent=5 // pred_region
      %s247 = ssub.s32 %s14, 1
      %p248 = scmp.lt.s32.totalorder %s19, 1
      %s249 = scalar_select %p248, %s19, 1
      %s250 = smul.addr %s249, 54
      %s251 = smul.addr %s250, 4
      %s252 = scalar_lea.vmem %s0, %s251
      %p253 = pneg %p40
      %p254 = pneg %p37
      %p255 = pneg %p61
      %p256 = pneg %p58
      %p257 = pneg %p82
      %p258 = pneg %p79
      %p259 = pneg %p103
      %p260 = pneg %p100
      %p261 = pneg %p124
      %p262 = pneg %p121
      %p263 = pneg %p150
      %p264 = pneg %p147
      %p265 = scmp.lt.s32.totalorder %s19, 1
      %s266 = scalar_select %p265, %s19, 1
      %s267 = smul.addr %s266, 8
      %s268 = smul.addr %s267, 4
      %s269 = scalar_lea.vmem %s5, %s268
      %p270 = pneg %p176
      %p271 = pneg %p173
      %p272 = scmp.lt.s32.totalorder %s19, 1
      %s273 = scalar_select %p272, %s19, 1
      %s274 = scalar_lea.vmem %s6, %s273
      %p275 = pneg %p202
      %p276 = pneg %p199
      %p277 = scmp.lt.s32.totalorder %s19, 1
      %s278 = scalar_select %p277, %s19, 1
      %s279 = scalar_lea.vmem %s7, %s278
      %p280 = scmp.lt.s32.totalorder %s19, 1
      %s281 = scalar_select %p280, %s19, 1
      %s282 = smul.addr %s281, 54
      %s283 = smul.addr %s282, 4
      %s284 = scalar_lea.vmem %s0, %s283
      %p285 = scmp.lt.s32.totalorder %s19, 1
      %s286 = scalar_select %p285, %s19, 1
      %s287 = smul.addr %s286, 8
      %s288 = smul.addr %s287, 4
      %s289 = scalar_lea.vmem %s5, %s288
      %p290 = scmp.lt.s32.totalorder %s19, 1
      %s291 = scalar_select %p290, %s19, 1
      %s292 = scalar_lea.vmem %s6, %s291
      %p293 = scmp.lt.s32.totalorder %s19, 1
      %s294 = scalar_select %p293, %s19, 1
      %s295 = scalar_lea.vmem %s7, %s294
      %v297 = vld [vmem:[%s284] sm:$0xf]
      %v298 = vld [vmem:[%s284 + $0x4] sm:$0xf]
      %v299 = vld [vmem:[%s284 + $0x8] sm:$0x1]
      %v300 = vld [vmem:[%s284 + $0xc] sm:$0xf]
      %v301 = vld [vmem:[%s284 + $0x10] sm:$0xf]
      %v302 = vld [vmem:[%s284 + $0x14] sm:$0x1]
      %v303 = vld [vmem:[%s284 + $0x18] sm:$0xf]
      %v304 = vld [vmem:[%s284 + $0x1c] sm:$0xf]
      %v305 = vld [vmem:[%s284 + $0x20] sm:$0x1]
      %v306 = vld [vmem:[%s284 + $0x24] sm:$0xf]
      %v307 = vld [vmem:[%s284 + $0x28] sm:$0xf]
      %v308 = vld [vmem:[%s284 + $0x2c] sm:$0x1]
      %v309 = vld [vmem:[%s284 + $0x30] sm:$0xf]
      %v310 = vld [vmem:[%s284 + $0x34] sm:$0xf]
      %v311 = vld [vmem:[%s284 + $0x38] sm:$0x1]
      %v312 = vld [vmem:[%s284 + $0x3c] sm:$0xf]
      %v313 = vld [vmem:[%s284 + $0x40] sm:$0xf]
      %v314 = vld [vmem:[%s284 + $0x44] sm:$0x1]
      %v315 = vld [vmem:[%s284 + $0x48] sm:$0xf]
      %v316 = vld [vmem:[%s284 + $0x4c] sm:$0xf]
      %v317 = vld [vmem:[%s284 + $0x50] sm:$0x1]
      %v318 = vld [vmem:[%s284 + $0x54] sm:$0xf]
      %v319 = vld [vmem:[%s284 + $0x58] sm:$0xf]
      %v320 = vld [vmem:[%s284 + $0x5c] sm:$0x1]
      %v321 = vld [vmem:[%s284 + $0x60] sm:$0xf]
      %v322 = vld [vmem:[%s284 + $0x64] sm:$0xf]
      %v323 = vld [vmem:[%s284 + $0x68] sm:$0x1]
      %v324 = vld [vmem:[%s284 + $0x6c] sm:$0xf]
      %v325 = vld [vmem:[%s284 + $0x70] sm:$0xf]
      %v326 = vld [vmem:[%s284 + $0x74] sm:$0x1]
      %v327 = vld [vmem:[%s284 + $0x78] sm:$0xf]
      %v328 = vld [vmem:[%s284 + $0x7c] sm:$0xf]
      %v329 = vld [vmem:[%s284 + $0x80] sm:$0x1]
      %v330 = vld [vmem:[%s284 + $0x84] sm:$0xf]
      %v331 = vld [vmem:[%s284 + $0x88] sm:$0xf]
      %v332 = vld [vmem:[%s284 + $0x8c] sm:$0x1]
      %v333 = vld [vmem:[%s284 + $0x90] sm:$0xf]
      %v334 = vld [vmem:[%s284 + $0x94] sm:$0xf]
      %v335 = vld [vmem:[%s284 + $0x98] sm:$0x1]
      %v336 = vld [vmem:[%s284 + $0x9c] sm:$0xf]
      %v337 = vld [vmem:[%s284 + $0xa0] sm:$0xf]
      %v338 = vld [vmem:[%s284 + $0xa4] sm:$0x1]
      %v339 = vld [vmem:[%s284 + $0xa8] sm:$0xf]
      %v340 = vld [vmem:[%s284 + $0xac] sm:$0xf]
      %v341 = vld [vmem:[%s284 + $0xb0] sm:$0x1]
      %v342 = vld [vmem:[%s284 + $0xb4] sm:$0xf]
      %v343 = vld [vmem:[%s284 + $0xb8] sm:$0xf]
      %v344 = vld [vmem:[%s284 + $0xbc] sm:$0x1]
      %v345 = vld [vmem:[%s284 + $0xc0] sm:$0xf]
      %v346 = vld [vmem:[%s284 + $0xc4] sm:$0xf]
      %v347 = vld [vmem:[%s284 + $0xc8] sm:$0x1]
      %v364 = vunpack.c.l.b16 %v298
      %v365 = vunpack.c.l.b16 %v299
      %v366 = vunpack.c.l.b16 %v301
      %v367 = vunpack.c.l.b16 %v302
      %v368 = vunpack.c.l.b16 %v304
      %v369 = vunpack.c.l.b16 %v305
      %v370 = vunpack.c.l.b16 %v307
      %v371 = vunpack.c.l.b16 %v308
      %v372 = vunpack.c.l.b16 %v310
      %v373 = vunpack.c.l.b16 %v311
      %v374 = vunpack.c.l.b16 %v313
      %v375 = vunpack.c.l.b16 %v314
      %v376 = vunpack.c.l.b16 %v316
      %v377 = vunpack.c.l.b16 %v317
      %v378 = vunpack.c.l.b16 %v319
      %v379 = vunpack.c.l.b16 %v320
      %v380 = vpack.c.b16 %v365, %v364
      %v381 = vpack.c.b16 %v367, %v366
      %v382 = vpack.c.b16 %v369, %v368
      %v383 = vpack.c.b16 %v371, %v370
      %v384 = vpack.c.b16 %v373, %v372
      %v385 = vpack.c.b16 %v375, %v374
      %v386 = vpack.c.b16 %v377, %v376
      %v387 = vpack.c.b16 %v379, %v378
      %v389 = vshrl.u32 %v380, 16
      %v391 = vshll.u32 %v380, 16
      %v393 = vrot.slane %v391, 1
      %v394 = vor.u32 %v389, %v393
      %v396 = vshrl.u32 %v381, 16
      %v398 = vshll.u32 %v381, 16
      %v400 = vrot.slane %v398, 1
      %v401 = vor.u32 %v396, %v400
      %v403 = vshrl.u32 %v382, 16
      %v405 = vshll.u32 %v382, 16
      %v407 = vrot.slane %v405, 1
      %v408 = vor.u32 %v403, %v407
      %v410 = vshrl.u32 %v383, 16
      %v412 = vshll.u32 %v383, 16
      %v414 = vrot.slane %v412, 1
      %v415 = vor.u32 %v410, %v414
      %v417 = vshrl.u32 %v384, 16
      %v419 = vshll.u32 %v384, 16
      %v421 = vrot.slane %v419, 1
      %v422 = vor.u32 %v417, %v421
      %v424 = vshrl.u32 %v385, 16
      %v426 = vshll.u32 %v385, 16
      %v428 = vrot.slane %v426, 1
      %v429 = vor.u32 %v424, %v428
      %v431 = vshrl.u32 %v386, 16
      %v433 = vshll.u32 %v386, 16
      %v435 = vrot.slane %v433, 1
      %v436 = vor.u32 %v431, %v435
      %v438 = vshrl.u32 %v387, 16
      %v440 = vshll.u32 %v387, 16
      %v442 = vrot.slane %v440, 1
      %v443 = vor.u32 %v438, %v442
      %444 = vrot.lane.b32.xlu0 %v394, 4
      %v445 = vpop.permute.xlu0 %444
      %446 = vrot.lane.b32.xlu0 %v401, 4
      %v447 = vpop.permute.xlu0 %446
      %448 = vrot.lane.b32.xlu0 %v408, 4
      %v449 = vpop.permute.xlu0 %448
      %450 = vrot.lane.b32.xlu0 %v415, 4
      %v451 = vpop.permute.xlu0 %450
      %452 = vrot.lane.b32.xlu0 %v422, 4
      %v453 = vpop.permute.xlu0 %452
      %454 = vrot.lane.b32.xlu0 %v429, 4
      %v455 = vpop.permute.xlu0 %454
      %456 = vrot.lane.b32.xlu0 %v436, 4
      %v457 = vpop.permute.xlu0 %456
      %458 = vrot.lane.b32.xlu0 %v443, 4
      %v459 = vpop.permute.xlu0 %458
      %v468 = vunpack.c.l.b16 %v297
      %v469 = vunpack.c.l.b16 %v300
      %v470 = vunpack.c.l.b16 %v303
      %v471 = vunpack.c.l.b16 %v306
      %v472 = vunpack.c.l.b16 %v309
      %v473 = vunpack.c.l.b16 %v312
      %v474 = vunpack.c.l.b16 %v315
      %v475 = vunpack.c.l.b16 %v318
      %v476 = vpack.c.b16 %v364, %v468
      %v477 = vpack.c.b16 %v366, %v469
      %v478 = vpack.c.b16 %v368, %v470
      %v479 = vpack.c.b16 %v370, %v471
      %v480 = vpack.c.b16 %v372, %v472
      %v481 = vpack.c.b16 %v374, %v473
      %v482 = vpack.c.b16 %v376, %v474
      %v483 = vpack.c.b16 %v378, %v475
      %v485 = vshrl.u32 %v476, 16
      %v487 = vshll.u32 %v476, 16
      %v489 = vrot.slane %v487, 1
      %v490 = vor.u32 %v485, %v489
      %v492 = vshrl.u32 %v477, 16
      %v494 = vshll.u32 %v477, 16
      %v496 = vrot.slane %v494, 1
      %v497 = vor.u32 %v492, %v496
      %v499 = vshrl.u32 %v478, 16
      %v501 = vshll.u32 %v478, 16
      %v503 = vrot.slane %v501, 1
      %v504 = vor.u32 %v499, %v503
      %v506 = vshrl.u32 %v479, 16
      %v508 = vshll.u32 %v479, 16
      %v510 = vrot.slane %v508, 1
      %v511 = vor.u32 %v506, %v510
      %v513 = vshrl.u32 %v480, 16
      %v515 = vshll.u32 %v480, 16
      %v517 = vrot.slane %v515, 1
      %v518 = vor.u32 %v513, %v517
      %v520 = vshrl.u32 %v481, 16
      %v522 = vshll.u32 %v481, 16
      %v524 = vrot.slane %v522, 1
      %v525 = vor.u32 %v520, %v524
      %v527 = vshrl.u32 %v482, 16
      %v529 = vshll.u32 %v482, 16
      %v531 = vrot.slane %v529, 1
      %v532 = vor.u32 %v527, %v531
      %v534 = vshrl.u32 %v483, 16
      %v536 = vshll.u32 %v483, 16
      %v538 = vrot.slane %v536, 1
      %v539 = vor.u32 %v534, %v538
      %540 = vrot.lane.b32.xlu0 %v490, 8
      %v541 = vpop.permute.xlu0 %540
      %542 = vrot.lane.b32.xlu0 %v497, 8
      %v543 = vpop.permute.xlu0 %542
      %544 = vrot.lane.b32.xlu0 %v504, 8
      %v545 = vpop.permute.xlu0 %544
      %546 = vrot.lane.b32.xlu0 %v511, 8
      %v547 = vpop.permute.xlu0 %546
      %548 = vrot.lane.b32.xlu0 %v518, 8
      %v549 = vpop.permute.xlu0 %548
      %550 = vrot.lane.b32.xlu0 %v525, 8
      %v551 = vpop.permute.xlu0 %550
      %552 = vrot.lane.b32.xlu0 %v532, 8
      %v553 = vpop.permute.xlu0 %552
      %554 = vrot.lane.b32.xlu0 %v539, 8
      %v555 = vpop.permute.xlu0 %554
      %v564 = vunpack.c.l.b16 %v324
      %v565 = vunpack.c.l.b16 %v327
      %v566 = vunpack.c.l.b16 %v330
      %v567 = vunpack.c.l.b16 %v333
      %v568 = vunpack.c.l.b16 %v336
      %v569 = vunpack.c.l.b16 %v339
      %v570 = vunpack.c.l.b16 %v342
      %v571 = vunpack.c.l.b16 %v345
      %v572 = vpack.c.b16 %v564, %v564
      %v573 = vpack.c.b16 %v565, %v565
      %v574 = vpack.c.b16 %v566, %v566
      %v575 = vpack.c.b16 %v567, %v567
      %v576 = vpack.c.b16 %v568, %v568
      %v577 = vpack.c.b16 %v569, %v569
      %v578 = vpack.c.b16 %v570, %v570
      %v579 = vpack.c.b16 %v571, %v571
      %580 = vrot.lane.b32.xlu0 %v572, 12
      %v581 = vpop.permute.xlu0 %580
      %582 = vrot.lane.b32.xlu0 %v573, 12
      %v583 = vpop.permute.xlu0 %582
      %584 = vrot.lane.b32.xlu0 %v574, 12
      %v585 = vpop.permute.xlu0 %584
      %586 = vrot.lane.b32.xlu0 %v575, 12
      %v587 = vpop.permute.xlu0 %586
      %588 = vrot.lane.b32.xlu0 %v576, 12
      %v589 = vpop.permute.xlu0 %588
      %590 = vrot.lane.b32.xlu0 %v577, 12
      %v591 = vpop.permute.xlu0 %590
      %592 = vrot.lane.b32.xlu0 %v578, 12
      %v593 = vpop.permute.xlu0 %592
      %594 = vrot.lane.b32.xlu0 %v579, 12
      %v595 = vpop.permute.xlu0 %594
      %v612 = vunpack.c.l.b16 %v325
      %v613 = vunpack.c.l.b16 %v326
      %v614 = vunpack.c.l.b16 %v328
      %v615 = vunpack.c.l.b16 %v329
      %v616 = vunpack.c.l.b16 %v331
      %v617 = vunpack.c.l.b16 %v332
      %v618 = vunpack.c.l.b16 %v334
      %v619 = vunpack.c.l.b16 %v335
      %v620 = vunpack.c.l.b16 %v337
      %v621 = vunpack.c.l.b16 %v338
      %v622 = vunpack.c.l.b16 %v340
      %v623 = vunpack.c.l.b16 %v341
      %v624 = vunpack.c.l.b16 %v343
      %v625 = vunpack.c.l.b16 %v344
      %v626 = vunpack.c.l.b16 %v346
      %v627 = vunpack.c.l.b16 %v347
      %v628 = vpack.c.b16 %v613, %v612
      %v629 = vpack.c.b16 %v615, %v614
      %v630 = vpack.c.b16 %v617, %v616
      %v631 = vpack.c.b16 %v619, %v618
      %v632 = vpack.c.b16 %v621, %v620
      %v633 = vpack.c.b16 %v623, %v622
      %v634 = vpack.c.b16 %v625, %v624
      %v635 = vpack.c.b16 %v627, %v626
      %v637 = vshrl.u32 %v628, 16
      %v639 = vshll.u32 %v628, 16
      %v641 = vrot.slane %v639, 1
      %v642 = vor.u32 %v637, %v641
      %v644 = vshrl.u32 %v629, 16
      %v646 = vshll.u32 %v629, 16
      %v648 = vrot.slane %v646, 1
      %v649 = vor.u32 %v644, %v648
      %v651 = vshrl.u32 %v630, 16
      %v653 = vshll.u32 %v630, 16
      %v655 = vrot.slane %v653, 1
      %v656 = vor.u32 %v651, %v655
      %v658 = vshrl.u32 %v631, 16
      %v660 = vshll.u32 %v631, 16
      %v662 = vrot.slane %v660, 1
      %v663 = vor.u32 %v658, %v662
      %v665 = vshrl.u32 %v632, 16
      %v667 = vshll.u32 %v632, 16
      %v669 = vrot.slane %v667, 1
      %v670 = vor.u32 %v665, %v669
      %v672 = vshrl.u32 %v633, 16
      %v674 = vshll.u32 %v633, 16
      %v676 = vrot.slane %v674, 1
      %v677 = vor.u32 %v672, %v676
      %v679 = vshrl.u32 %v634, 16
      %v681 = vshll.u32 %v634, 16
      %v683 = vrot.slane %v681, 1
      %v684 = vor.u32 %v679, %v683
      %v686 = vshrl.u32 %v635, 16
      %v688 = vshll.u32 %v635, 16
      %v690 = vrot.slane %v688, 1
      %v691 = vor.u32 %v686, %v690
      %692 = vrot.lane.b32.xlu0 %v642, 16
      %v693 = vpop.permute.xlu0 %692
      %694 = vrot.lane.b32.xlu0 %v649, 16
      %v695 = vpop.permute.xlu0 %694
      %696 = vrot.lane.b32.xlu0 %v656, 16
      %v697 = vpop.permute.xlu0 %696
      %698 = vrot.lane.b32.xlu0 %v663, 16
      %v699 = vpop.permute.xlu0 %698
      %700 = vrot.lane.b32.xlu0 %v670, 16
      %v701 = vpop.permute.xlu0 %700
      %702 = vrot.lane.b32.xlu0 %v677, 16
      %v703 = vpop.permute.xlu0 %702
      %704 = vrot.lane.b32.xlu0 %v684, 16
      %v705 = vpop.permute.xlu0 %704
      %706 = vrot.lane.b32.xlu0 %v691, 16
      %v707 = vpop.permute.xlu0 %706
      %v708 = vpack.c.b16 %v612, %v564
      %v709 = vpack.c.b16 %v614, %v565
      %v710 = vpack.c.b16 %v616, %v566
      %v711 = vpack.c.b16 %v618, %v567
      %v712 = vpack.c.b16 %v620, %v568
      %v713 = vpack.c.b16 %v622, %v569
      %v714 = vpack.c.b16 %v624, %v570
      %v715 = vpack.c.b16 %v626, %v571
      %v717 = vshrl.u32 %v708, 16
      %v719 = vshll.u32 %v708, 16
      %v721 = vrot.slane %v719, 1
      %v722 = vor.u32 %v717, %v721
      %v724 = vshrl.u32 %v709, 16
      %v726 = vshll.u32 %v709, 16
      %v728 = vrot.slane %v726, 1
      %v729 = vor.u32 %v724, %v728
      %v731 = vshrl.u32 %v710, 16
      %v733 = vshll.u32 %v710, 16
      %v735 = vrot.slane %v733, 1
      %v736 = vor.u32 %v731, %v735
      %v738 = vshrl.u32 %v711, 16
      %v740 = vshll.u32 %v711, 16
      %v742 = vrot.slane %v740, 1
      %v743 = vor.u32 %v738, %v742
      %v745 = vshrl.u32 %v712, 16
      %v747 = vshll.u32 %v712, 16
      %v749 = vrot.slane %v747, 1
      %v750 = vor.u32 %v745, %v749
      %v752 = vshrl.u32 %v713, 16
      %v754 = vshll.u32 %v713, 16
      %v756 = vrot.slane %v754, 1
      %v757 = vor.u32 %v752, %v756
      %v759 = vshrl.u32 %v714, 16
      %v761 = vshll.u32 %v714, 16
      %v763 = vrot.slane %v761, 1
      %v764 = vor.u32 %v759, %v763
      %v766 = vshrl.u32 %v715, 16
      %v768 = vshll.u32 %v715, 16
      %v770 = vrot.slane %v768, 1
      %v771 = vor.u32 %v766, %v770
      %772 = vrot.lane.b32.xlu0 %v722, 20
      %v773 = vpop.permute.xlu0 %772
      %774 = vrot.lane.b32.xlu0 %v729, 20
      %v775 = vpop.permute.xlu0 %774
      %776 = vrot.lane.b32.xlu0 %v736, 20
      %v777 = vpop.permute.xlu0 %776
      %778 = vrot.lane.b32.xlu0 %v743, 20
      %v779 = vpop.permute.xlu0 %778
      %780 = vrot.lane.b32.xlu0 %v750, 20
      %v781 = vpop.permute.xlu0 %780
      %782 = vrot.lane.b32.xlu0 %v757, 20
      %v783 = vpop.permute.xlu0 %782
      %784 = vrot.lane.b32.xlu0 %v764, 20
      %v785 = vpop.permute.xlu0 %784
      %786 = vrot.lane.b32.xlu0 %v771, 20
      %v787 = vpop.permute.xlu0 %786
      %v789 = vunpack.c.l.b16 %v321
      %v790 = vpack.c.b16 %v469, %v469
      %v791 = vpack.c.b16 %v470, %v470
      %v792 = vpack.c.b16 %v471, %v471
      %v793 = vpack.c.b16 %v472, %v472
      %v794 = vpack.c.b16 %v473, %v473
      %v795 = vpack.c.b16 %v474, %v474
      %v796 = vpack.c.b16 %v475, %v475
      %v797 = vpack.c.b16 %v789, %v789
      %798 = vrot.lane.b32.xlu0 %v790, 24
      %v799 = vpop.permute.xlu0 %798
      %800 = vrot.lane.b32.xlu0 %v791, 24
      %v801 = vpop.permute.xlu0 %800
      %802 = vrot.lane.b32.xlu0 %v792, 24
      %v803 = vpop.permute.xlu0 %802
      %804 = vrot.lane.b32.xlu0 %v793, 24
      %v805 = vpop.permute.xlu0 %804
      %806 = vrot.lane.b32.xlu0 %v794, 24
      %v807 = vpop.permute.xlu0 %806
      %808 = vrot.lane.b32.xlu0 %v795, 24
      %v809 = vpop.permute.xlu0 %808
      %810 = vrot.lane.b32.xlu0 %v796, 24
      %v811 = vpop.permute.xlu0 %810
      %812 = vrot.lane.b32.xlu0 %v797, 24
      %v813 = vpop.permute.xlu0 %812
      %v816 = vunpack.c.l.b16 %v322
      %v817 = vunpack.c.l.b16 %v323
      %v818 = vpack.c.b16 %v817, %v816
      %v820 = vshrl.u32 %v818, 16
      %v822 = vshll.u32 %v818, 16
      %v824 = vrot.slane %v822, 1
      %v825 = vor.u32 %v820, %v824
      %826 = vrot.lane.b32.xlu0 %v401, 28
      %v827 = vpop.permute.xlu0 %826
      %828 = vrot.lane.b32.xlu0 %v408, 28
      %v829 = vpop.permute.xlu0 %828
      %830 = vrot.lane.b32.xlu0 %v415, 28
      %v831 = vpop.permute.xlu0 %830
      %832 = vrot.lane.b32.xlu0 %v422, 28
      %v833 = vpop.permute.xlu0 %832
      %834 = vrot.lane.b32.xlu0 %v429, 28
      %v835 = vpop.permute.xlu0 %834
      %836 = vrot.lane.b32.xlu0 %v436, 28
      %v837 = vpop.permute.xlu0 %836
      %838 = vrot.lane.b32.xlu0 %v443, 28
      %v839 = vpop.permute.xlu0 %838
      %840 = vrot.lane.b32.xlu0 %v825, 28
      %v841 = vpop.permute.xlu0 %840
      %v842 = vpack.c.b16 %v816, %v789
      %v844 = vshrl.u32 %v842, 16
      %v846 = vshll.u32 %v842, 16
      %v848 = vrot.slane %v846, 1
      %v849 = vor.u32 %v844, %v848
      %850 = vrot.lane.b32.xlu0 %v497, 32
      %v851 = vpop.permute.xlu0 %850
      %852 = vrot.lane.b32.xlu0 %v504, 32
      %v853 = vpop.permute.xlu0 %852
      %854 = vrot.lane.b32.xlu0 %v511, 32
      %v855 = vpop.permute.xlu0 %854
      %856 = vrot.lane.b32.xlu0 %v518, 32
      %v857 = vpop.permute.xlu0 %856
      %858 = vrot.lane.b32.xlu0 %v525, 32
      %v859 = vpop.permute.xlu0 %858
      %860 = vrot.lane.b32.xlu0 %v532, 32
      %v861 = vpop.permute.xlu0 %860
      %862 = vrot.lane.b32.xlu0 %v539, 32
      %v863 = vpop.permute.xlu0 %862
      %864 = vrot.lane.b32.xlu0 %v849, 32
      %v865 = vpop.permute.xlu0 %864
      %vm866 = vcmask 31744
      %v869 = vsel %vm866, %v297, %v445
      %v872 = vsel %vm866, %v300, %v447
      %v875 = vsel %vm866, %v303, %v449
      %v878 = vsel %vm866, %v306, %v451
      %v881 = vsel %vm866, %v309, %v453
      %v884 = vsel %vm866, %v312, %v455
      %v887 = vsel %vm866, %v315, %v457
      %v890 = vsel %vm866, %v318, %v459
      %vm891 = vcmask 64512
      %v893 = vsel %vm891, %v869, %v541
      %v895 = vsel %vm891, %v872, %v543
      %v897 = vsel %vm891, %v875, %v545
      %v899 = vsel %vm891, %v878, %v547
      %v901 = vsel %vm891, %v881, %v549
      %v903 = vsel %vm891, %v884, %v551
      %v905 = vsel %vm891, %v887, %v553
      %v907 = vsel %vm891, %v890, %v555
      %vm908 = vcmask 97280
      %v910 = vsel %vm908, %v893, %v581
      %v912 = vsel %vm908, %v895, %v583
      %v914 = vsel %vm908, %v897, %v585
      %v916 = vsel %vm908, %v899, %v587
      %v918 = vsel %vm908, %v901, %v589
      %v920 = vsel %vm908, %v903, %v591
      %v922 = vsel %vm908, %v905, %v593
      %v924 = vsel %vm908, %v907, %v595
      %vm925 = vcmask 130048
      %v927 = vsel %vm925, %v910, %v693
      %v929 = vsel %vm925, %v912, %v695
      %v931 = vsel %vm925, %v914, %v697
      %v933 = vsel %vm925, %v916, %v699
      %v935 = vsel %vm925, %v918, %v701
      %v937 = vsel %vm925, %v920, %v703
      %v939 = vsel %vm925, %v922, %v705
      %v941 = vsel %vm925, %v924, %v707
      %vm942 = vcmask 162816
      %v944 = vsel %vm942, %v927, %v773
      %v946 = vsel %vm942, %v929, %v775
      %v948 = vsel %vm942, %v931, %v777
      %v950 = vsel %vm942, %v933, %v779
      %v952 = vsel %vm942, %v935, %v781
      %v954 = vsel %vm942, %v937, %v783
      %v956 = vsel %vm942, %v939, %v785
      %v958 = vsel %vm942, %v941, %v787
      %vm959 = vcmask 195584
      %v961 = vsel %vm959, %v944, %v799
      %v963 = vsel %vm959, %v946, %v801
      %v965 = vsel %vm959, %v948, %v803
      %v967 = vsel %vm959, %v950, %v805
      %v969 = vsel %vm959, %v952, %v807
      %v971 = vsel %vm959, %v954, %v809
      %v973 = vsel %vm959, %v956, %v811
      %v975 = vsel %vm959, %v958, %v813
      %vm976 = vcmask 228352
      %v978 = vsel %vm976, %v961, %v827
      %v980 = vsel %vm976, %v963, %v829
      %v982 = vsel %vm976, %v965, %v831
      %v984 = vsel %vm976, %v967, %v833
      %v986 = vsel %vm976, %v969, %v835
      %v988 = vsel %vm976, %v971, %v837
      %v990 = vsel %vm976, %v973, %v839
      %v992 = vsel %vm976, %v975, %v841
      %vm993 = vcmask 261120
      %v995 = vsel %vm993, %v978, %v851
      %v997 = vsel %vm993, %v980, %v853
      %v999 = vsel %vm993, %v982, %v855
      %v1001 = vsel %vm993, %v984, %v857
      %v1003 = vsel %vm993, %v986, %v859
      %v1005 = vsel %vm993, %v988, %v861
      %v1007 = vsel %vm993, %v990, %v863
      %v1009 = vsel %vm993, %v992, %v865
      %v1010 = vld [vmem:[%s1] sm:$0xf]
      %v1011 = vld [vmem:[%s1 + $0x4] sm:$0xf]
      %v1012 = vld [vmem:[%s1 + $0x8] sm:$0xf]
      %v1013 = vld [vmem:[%s1 + $0xc] sm:$0xf]
      %v1014 = vld [vmem:[%s1 + $0x10] sm:$0x3]
      %v1015 = vld [vmem:[%s2] sm:$0x1]
      %v1017 = vlaneseq
      %v1018 = vshrl.u32 %v1017, 7
      %v1019 = vsub.s32 0, %v1018
      %v1020 = vrot.slane %v1015, %v1019
      %v1030 = vunpack.c.l.b16 %v995
      %v1031 = vunpack.c.l.b16 %v997
      %v1032 = vunpack.c.l.b16 %v999
      %v1033 = vunpack.c.l.b16 %v1001
      %v1034 = vunpack.c.l.b16 %v1003
      %v1035 = vunpack.c.l.b16 %v1005
      %v1036 = vunpack.c.l.b16 %v1007
      %v1037 = vunpack.c.l.b16 %v1009
      %v1038 = vpack.c.b16 %v1031, %v1030
      %v1039 = vpack.c.b16 %v1033, %v1032
      %v1040 = vpack.c.b16 %v1035, %v1034
      %v1041 = vpack.c.b16 %v1037, %v1036
      %v1047 = vunpack.c.l.b16 %v1010
      %v1048 = vunpack.c.l.b16 %v1011
      %v1049 = vunpack.c.l.b16 %v1012
      %v1050 = vunpack.c.l.b16 %v1013
      %v1051 = vunpack.c.l.b16 %v1014
      %v1052 = vpack.c.b16 %v1048, %v1047
      %v1053 = vpack.c.b16 %v1050, %v1049
      %v1054 = vpack.c.b16 %v1051, %v1051
      %vm1057 = vcmask 293888
      %v1059 = vsel %vm1057, %v1038, 0
      %v1062 = vsel %vm1057, %v1039, 0
      %v1065 = vsel %vm1057, %v1040, 0
      %v1068 = vsel %vm1057, %v1041, 0
      %vm1070 = vcmask 1041408
      %v1072 = vsel %vm1070, %v1054, 0
      %1074 = vmatprep.subr.bf16.mxu0 0
      %1075 = vmatpush1.bf16.msra.mxu0 %v1052
      %1076 = vmatprep.subr.bf16.mxu0 0
      %1077 = vmatpush1.bf16.msra.mxu0 %v1053
      %1078 = vmatprep.subr.bf16.mxu0 0
      %1079 = vmatpush1.bf16.msra.mxu0 %v1072
      %1080 = vmatprep.subr.bf16.mxu0 0
      %1081 = vmatpush1.bf16.msra.mxu0 0
      %1082 = vmatprep.subr.bf16.mxu0 0
      %1083 = vmatpush1.bf16.msra.mxu0 0
      %1084 = vmatprep.subr.bf16.mxu0 0
      %1085 = vmatpush1.bf16.msra.mxu0 0
      %1086 = vmatprep.subr.bf16.mxu0 0
      %1087 = vmatpush1.bf16.msra.mxu0 0
      %1088 = vmatprep.subr.bf16.mxu0 0
      %1089 = vmatpush1.bf16.msra.mxu0 0
      %1090 = vmatprep.subr.bf16.mxu0 0
      %1091 = vmatpush1.bf16.msra.mxu0 0
      %1092 = vmatprep.subr.bf16.mxu0 0
      %1093 = vmatpush1.bf16.msra.mxu0 0
      %1094 = vmatprep.subr.bf16.mxu0 0
      %1095 = vmatpush1.bf16.msra.mxu0 0
      %1096 = vmatprep.subr.bf16.mxu0 0
      %1097 = vmatpush1.bf16.msra.mxu0 0
      %1098 = vmatprep.subr.bf16.mxu0 0
      %1099 = vmatpush1.bf16.msra.mxu0 0
      %1100 = vmatprep.subr.bf16.mxu0 0
      %1101 = vmatpush1.bf16.msra.mxu0 0
      %1102 = vmatprep.subr.bf16.mxu0 0
      %1103 = vmatpush1.bf16.msra.mxu0 0
      %1104 = vmatprep.subr.bf16.mxu0 0
      %1105 = vmatpush1.bf16.msra.mxu0 0
      %1106 = vmatprep.mubr.bf16.mxu0 0
      %1107 = vmatmul.mubr.bf16.gmra.mrb[0].mxu0 %v1059
      %v1108 = vpop.f32.mrb[0].mxu0
      %v1109 = vadd.f32 %v1020, %v1108
      %v1110 = vpop.f32.mrb[0].mxu0
      %v1111 = vpop.f32.mrb[0].mxu0
      %v1112 = vadd.f32 %v1020, %v1111
      %v1113 = vpop.f32.mrb[0].mxu0
      %1114 = vmatprep.mubr.bf16.mxu0 0
      %1115 = vmatmul.mubr.bf16.gmra.mrb[0].mxu0 %v1062
      %v1116 = vpop.f32.mrb[0].mxu0
      %v1117 = vadd.f32 %v1020, %v1116
      %v1118 = vpop.f32.mrb[0].mxu0
      %v1119 = vpop.f32.mrb[0].mxu0
      %v1120 = vadd.f32 %v1020, %v1119
      %v1121 = vpop.f32.mrb[0].mxu0
      %1122 = vmatprep.mubr.bf16.mxu0 0
      %1123 = vmatmul.mubr.bf16.gmra.mrb[0].mxu0 %v1065
      %v1124 = vpop.f32.mrb[0].mxu0
      %v1125 = vadd.f32 %v1020, %v1124
      %v1126 = vpop.f32.mrb[0].mxu0
      %v1127 = vpop.f32.mrb[0].mxu0
      %v1128 = vadd.f32 %v1020, %v1127
      %v1129 = vpop.f32.mrb[0].mxu0
      %1130 = vmatprep.mubr.bf16.mxu0 0
      %1131 = vmatmul.mubr.bf16.gmra.mrb[0].mxu0 %v1068
      %v1132 = vpop.f32.mrb[0].mxu0
      %v1133 = vadd.f32 %v1020, %v1132
      %v1134 = vpop.f32.mrb[0].mxu0
      %v1135 = vpop.f32.mrb[0].mxu0
      %v1136 = vadd.f32 %v1020, %v1135
      %v1137 = vpop.f32.mrb[0].mxu0
      %1138 = vdwg.mxu0
      %v1139 = vpack.c.bf16 %v1112, %v1109
      %v1140 = vpack.c.bf16 %v1120, %v1117
      %v1141 = vpack.c.bf16 %v1128, %v1125
      %v1142 = vpack.c.bf16 %v1136, %v1133
      %v1147 = vunpack.c.l.b16 %v1139
      %v1148 = vunpack.c.h.b16 %v1139
      %v1149 = vunpack.c.l.b16 %v1140
      %v1150 = vunpack.c.h.b16 %v1140
      %v1151 = vunpack.c.l.b16 %v1141
      %v1152 = vunpack.c.h.b16 %v1141
      %v1153 = vunpack.c.l.b16 %v1142
      %v1154 = vunpack.c.h.b16 %v1142
      %v1155 = vpack.c.b16 %v1147, %v1147
      %v1156 = vpack.c.b16 %v1148, %v1148
      %v1157 = vpack.c.b16 %v1149, %v1149
      %v1158 = vpack.c.b16 %v1150, %v1150
      %v1159 = vpack.c.b16 %v1151, %v1151
      %v1160 = vpack.c.b16 %v1152, %v1152
      %v1161 = vpack.c.b16 %v1153, %v1153
      %v1162 = vpack.c.b16 %v1154, %v1154
      %vm1171 = vcmask 60416
      %1172 = vst.msk [vmem:[%s289] sm:$0xf] %vm1171, %v1155
      %1173 = vst.msk [vmem:[%s289 + $0x4] sm:$0xf] %vm1171, %v1156
      %1174 = vst.msk [vmem:[%s289 + $0x8] sm:$0xf] %vm1171, %v1157
      %1175 = vst.msk [vmem:[%s289 + $0xc] sm:$0xf] %vm1171, %v1158
      %1176 = vst.msk [vmem:[%s289 + $0x10] sm:$0xf] %vm1171, %v1159
      %1177 = vst.msk [vmem:[%s289 + $0x14] sm:$0xf] %vm1171, %v1160
      %1178 = vst.msk [vmem:[%s289 + $0x18] sm:$0xf] %vm1171, %v1161
      %1179 = vst.msk [vmem:[%s289 + $0x1c] sm:$0xf] %vm1171, %v1162
      %v1180 = vunpack.c.l.bf16 %v1139
      %v1181 = vunpack.c.h.bf16 %v1139
      %v1182 = vunpack.c.l.bf16 %v1140
      %v1183 = vunpack.c.h.bf16 %v1140
      %v1184 = vunpack.c.l.bf16 %v1141
      %v1185 = vunpack.c.h.bf16 %v1141
      %v1186 = vunpack.c.l.bf16 %v1142
      %v1187 = vunpack.c.h.bf16 %v1142
      %v1188 = vsel %vm891, %v1180, 0.0
      %v1189 = vsel %vm891, %v1181, 0.0
      %v1190 = vadd.f32 %v1188, %v1189
      %v1191 = vsel %vm891, %v1182, 0.0
      %v1192 = vadd.f32 %v1190, %v1191
      %v1193 = vsel %vm891, %v1183, 0.0
      %v1194 = vadd.f32 %v1192, %v1193
      %v1195 = vsel %vm891, %v1184, 0.0
      %v1196 = vadd.f32 %v1194, %v1195
      %v1197 = vsel %vm891, %v1185, 0.0
      %v1198 = vadd.f32 %v1196, %v1197
      %v1199 = vsel %vm891, %v1186, 0.0
      %v1200 = vadd.f32 %v1198, %v1199
      %v1201 = vsel %vm891, %v1187, 0.0
      %v1202 = vadd.f32 %v1200, %v1201
      %v1203 = vrot.slane %v1202, 4
      %v1204 = vadd.f32 %v1202, %v1203
      %v1205 = vrot.slane %v1204, 2
      %v1206 = vadd.f32 %v1204, %v1205
      %v1207 = vrot.slane %v1206, 1
      %v1208 = vadd.f32 %v1206, %v1207
      %v1209 = vmul.f32 %v1208, 0.015625
      %v1210 = vsub.f32 %v1180, %v1209
      %v1211 = vsub.f32 %v1181, %v1209
      %v1212 = vsub.f32 %v1182, %v1209
      %v1213 = vsub.f32 %v1183, %v1209
      %v1214 = vsub.f32 %v1184, %v1209
      %v1215 = vsub.f32 %v1185, %v1209
      %v1216 = vsub.f32 %v1186, %v1209
      %v1217 = vsub.f32 %v1187, %v1209
      %vm1218 = vcmask 57344
      %1219 = vst.msk [vmem:[%s292] sm:$0x1] %vm1218, %v1208
      %v1220 = vmul.f32 %v1210, %v1210
      %v1221 = vmul.f32 %v1211, %v1211
      %v1222 = vmul.f32 %v1212, %v1212
      %v1223 = vmul.f32 %v1213, %v1213
      %v1224 = vmul.f32 %v1214, %v1214
      %v1225 = vmul.f32 %v1215, %v1215
      %v1226 = vmul.f32 %v1216, %v1216
      %v1227 = vmul.f32 %v1217, %v1217
      %v1228 = vsel %vm891, %v1220, 0.0
      %v1229 = vsel %vm891, %v1221, 0.0
      %v1230 = vadd.f32 %v1228, %v1229
      %v1231 = vsel %vm891, %v1222, 0.0
      %v1232 = vadd.f32 %v1230, %v1231
      %v1233 = vsel %vm891, %v1223, 0.0
      %v1234 = vadd.f32 %v1232, %v1233
      %v1235 = vsel %vm891, %v1224, 0.0
      %v1236 = vadd.f32 %v1234, %v1235
      %v1237 = vsel %vm891, %v1225, 0.0
      %v1238 = vadd.f32 %v1236, %v1237
      %v1239 = vsel %vm891, %v1226, 0.0
      %v1240 = vadd.f32 %v1238, %v1239
      %v1241 = vsel %vm891, %v1227, 0.0
      %v1242 = vadd.f32 %v1240, %v1241
      %v1243 = vrot.slane %v1242, 4
      %v1244 = vadd.f32 %v1242, %v1243
      %v1245 = vrot.slane %v1244, 2
      %v1246 = vadd.f32 %v1244, %v1245
      %v1247 = vrot.slane %v1246, 1
      %v1248 = vadd.f32 %v1246, %v1247
      %1249 = vst.msk [vmem:[%s295] sm:$0x1] %vm1218, %v1248
      %p1250 = scmp.lt.s32.totalorder %s19, 1
      %s1251 = scalar_select %p1250, %s19, 1
      %s1252 = smul.addr %s1251, 8
      %s1253 = smul.addr %s1252, 4
      %s1254 = scalar_lea.vmem %s5, %s1253
      %p1255 = scmp.lt.s32.totalorder %s19, 1
      %s1256 = scalar_select %p1255, %s19, 1
      %s1257 = scalar_lea.vmem %s6, %s1256
      %p1258 = scmp.lt.s32.totalorder %s19, 1
      %s1259 = scalar_select %p1258, %s19, 1
      %s1260 = scalar_lea.vmem %s7, %s1259
      // Predicated region
      $region41: #{resnet_block_forward.3} parent=39 // pred_check
        %p1261 = pneg %p147
      $region42: #{resnet_block_forward.3} parent=39 // pred_check_branch
        %1263 = sbr.rel (%p1261) target = $region44
      $region43: #{resnet_block_forward.3} parent=39 // pred_region
        _
      $region44: #{resnet_block_forward.3} parent=39 // pred_fallthru
        _
      // Predicated region
      $region45: #{resnet_block_forward.3} parent=39 // pred_check
        %p1264 = pneg %p173
      $region46: #{resnet_block_forward.3} parent=39 // pred_check_branch
        %1266 = sbr.rel (%p1264) target = $region48
      $region47: #{resnet_block_forward.3} parent=39 // pred_region
        _
      $region48: #{resnet_block_forward.3} parent=39 // pred_fallthru
        _
      // Predicated region
      $region49: #{resnet_block_forward.3} parent=39 // pred_check
        %p1267 = pneg %p199
      $region50: #{resnet_block_forward.3} parent=39 // pred_check_branch
        %1269 = sbr.rel (%p1267) target = $region52
      $region51: #{resnet_block_forward.3} parent=39 // pred_region
        _
      $region52: #{resnet_block_forward.3} parent=39 // pred_fallthru
        _
    $region40: #{resnet_block_forward.3} parent=5 // pred_fallthru
      _
    %p1270 = scmp.le.s32.totalorder 2, %s14
    // Predicated region
    $region53: #{resnet_block_forward.3} parent=5 // pred_check
      %p1271 = pneg %p1270
    $region54: #{resnet_block_forward.3} parent=5 // pred_check_branch
      %1273 = sbr.rel (%p1271) target = $region56
    $region55: #{resnet_block_forward.3} parent=5 // pred_region
      %s1274 = ssub.s32 %s14, 2
      // Predicated region
      $region57: #{resnet_block_forward.3} parent=55 // pred_check
        %p1275 = pneg %p153
      $region58: #{resnet_block_forward.3} parent=55 // pred_check_branch
        %1277 = sbr.rel (%p1275) target = $region60
      $region59: #{resnet_block_forward.3} parent=55 // pred_region
        %p1278 = scmp.lt.s32.totalorder %s20, 1
        %s1279 = scalar_select %p1278, %s20, 1
        %s1280 = smul.addr %s1279, 8
        %s1281 = smul.addr %s1280, 4
        %s1282 = scalar_lea.vmem %s5, %s1281
      $region60: #{resnet_block_forward.3} parent=55 // pred_fallthru
        _
      // Predicated region
      $region61: #{resnet_block_forward.3} parent=55 // pred_check
        %p1283 = pneg %p179
      $region62: #{resnet_block_forward.3} parent=55 // pred_check_branch
        %1285 = sbr.rel (%p1283) target = $region64
      $region63: #{resnet_block_forward.3} parent=55 // pred_region
        %p1286 = scmp.lt.s32.totalorder %s20, 1
        %s1287 = scalar_select %p1286, %s20, 1
        %s1288 = scalar_lea.vmem %s6, %s1287
      $region64: #{resnet_block_forward.3} parent=55 // pred_fallthru
        _
      // Predicated region
      $region65: #{resnet_block_forward.3} parent=55 // pred_check
        %p1289 = pneg %p205
      $region66: #{resnet_block_forward.3} parent=55 // pred_check_branch
        %1291 = sbr.rel (%p1289) target = $region68
      $region67: #{resnet_block_forward.3} parent=55 // pred_region
        %p1292 = scmp.lt.s32.totalorder %s20, 1
        %s1293 = scalar_select %p1292, %s20, 1
        %s1294 = scalar_lea.vmem %s7, %s1293
      $region68: #{resnet_block_forward.3} parent=55 // pred_fallthru
        _
    $region56: #{resnet_block_forward.3} parent=5 // pred_fallthru
      _
  $region6: #{resnet_block_forward.3} parent=0 // loop_footer
    %s18 = sadd.s32 1, %s14
  $region7: #{resnet_block_forward.3} parent=0 // loop_footer_branch
    %13 = sbr.rel target = $region3
  $region8: #{resnet_block_forward.3} parent=0 // loop_exit
    _

</llo_original>
